<compile_context>
chip_gen: v7x
topology: tpu7x:2x2x1
jax: 0.10.0
libtpu: 0.0.40
codegen_flags: <defaults>
</compile_context>

<pallas_src>
import functools

import jax
import jax.numpy as jnp
from jax.experimental import pallas as pl
from jax.experimental.pallas import tpu as pltpu

LANE = 128


def _round_up(v, m):
    return ((v + m - 1) // m) * m


def _pad2(x, rows, cols):
    return jnp.pad(x, ((0, rows - x.shape[0]), (0, cols - x.shape[1])))


def _vmem_limit_bytes():
    """Per-generation VMEM budget: ~75% of physical, capped at 96 MiB."""
    try:
        cap = int(pltpu.get_tpu_info().vmem_capacity_bytes)
    except Exception:
        cap = 64 * 1024 * 1024  # v7x-safe fallback
    return max(32 * 1024 * 1024, min(int(cap * 0.75), 96 * 1024 * 1024))


def _largest_dividing_tile(n_pad, cap):
    """Largest multiple of 128 that divides n_pad and is <= cap."""
    cap = max(LANE, min(cap, n_pad))
    best = LANE
    t = LANE
    while t <= cap:
        if n_pad % t == 0:
            best = t
        t += LANE
    return best


def _pick_tiles(n_pad):
    """tile_m grows first (<=1024, but keep >=2 row tiles for megacore);
    tile_k stays <=512."""
    cap_m = 1024
    if n_pad >= 2 * LANE:
        cap_m = min(cap_m, n_pad // 2)
    tile_m = _largest_dividing_tile(n_pad, cap_m)
    tile_k = _largest_dividing_tile(n_pad, 512)
    return tile_m, tile_k


def _xw_resident_ok(n_pad, h, h_out, tile_m, tile_k, in_bytes, vmem_limit):
    """Conservative VMEM accounting (assume every block is double-buffered)."""
    xw = 2 * n_pad * h * in_bytes
    a = 2 * tile_m * tile_k * in_bytes
    out = 2 * tile_m * h_out * 4
    acc = tile_m * h * 4
    small = 2 * 1024 * 1024  # bias, fused weights, compiler scratch headroom
    return (xw + a + out + acc + small) <= int(0.8 * vmem_limit)


# ----------------------------- Pallas kernels ------------------------------

def _xw_kernel(x_ref, w_ref, o_ref):
    """Row-tiled feature transform (layer 0 only): o = X_tile @ W."""
    o_ref[...] = jnp.dot(x_ref[...], w_ref[...],
                         preferred_element_type=jnp.float32).astype(o_ref.dtype)


def xw_matmul(x, w, *, tile_m, out_dtype, vmem_limit):
    n, c = x.shape
    h = w.shape[1]
    return pl.pallas_call(
        _xw_kernel,
        out_shape=jax.ShapeDtypeStruct((n, h), out_dtype),
        grid_spec=pltpu.PrefetchScalarGridSpec(
            num_scalar_prefetch=0,
            grid=(n // tile_m,),
            in_specs=[pl.BlockSpec((tile_m, c), lambda i: (i, 0)),
                      pl.BlockSpec((c, h), lambda i: (0, 0))],
            out_specs=pl.BlockSpec((tile_m, h), lambda i: (i, 0)),
        ),
        compiler_params=pltpu.CompilerParams(
            dimension_semantics=("parallel",),
            vmem_limit_bytes=vmem_limit),
    )(x, w)


def _agg_kernel(*refs, apply_relu, fuse_next, add_next_bias, xw_resident,
                tile_k):
    """Tiled aggregation with fused epilogue.

    acc  = A_hat_tile @ XW  (K-reduction over grid axis 1, f32 accumulator,
                             bias folded into the k==0 init)
    epi  = ReLU(acc)                         (always, GCN act)
           [@ W_next (+ b_next)]             (fused next-layer XW / lin head)
    """
    if fuse_next and add_next_bias:
        a_ref, xw_ref, b_ref, wn_ref, bn_ref, o_ref, acc_ref = refs
    elif fuse_next:
        a_ref, xw_ref, b_ref, wn_ref, o_ref, acc_ref = refs
        bn_ref = None
    else:
        a_ref, xw_ref, b_ref, o_ref, acc_ref = refs
        wn_ref = bn_ref = None

    k = pl.program_id(1)

    @pl.when(k == 0)
    def _():
        # Fold the bias into the accumulator init (saves an epilogue VPU pass).
        acc_ref[...] = jnp.broadcast_to(b_ref[...].astype(jnp.float32),
                                        acc_ref.shape)

    if xw_resident:
        off = pl.multiple_of(k * tile_k, tile_k)
        xw_blk = xw_ref[pl.ds(off, tile_k), :]
    else:
        xw_blk = xw_ref[...]

    acc_ref[...] += jnp.dot(a_ref[...], xw_blk,
                            preferred_element_type=jnp.float32)

    @pl.when(k == pl.num_programs(1) - 1)
    def _():
        hid = acc_ref[...]
        if apply_relu:
            hid = jnp.maximum(hid, 0.0)   # f32 epilogue (native VALU on v5e too)
        if fuse_next:
            out = jnp.dot(hid.astype(wn_ref.dtype), wn_ref[...],
                          preferred_element_type=jnp.float32)
            if add_next_bias:
                out = out + bn_ref[...].astype(jnp.float32)
            o_ref[...] = out.astype(o_ref.dtype)
        else:
            o_ref[...] = hid.astype(o_ref.dtype)


def gcn_aggregate(a_hat, xw, bias2d, *, tile_m, tile_k, apply_relu,
                  out_dtype, xw_resident, vmem_limit,
                  w_next=None, b_next=None):
    """out = relu(A_hat @ XW + b) [@ W_next (+ b_next)]."""
    n = a_hat.shape[0]
    h = xw.shape[1]
    fuse_next = w_next is not None
    add_next_bias = b_next is not None
    h_out = w_next.shape[1] if fuse_next else h

    in_specs = [pl.BlockSpec((tile_m, tile_k), lambda i, k: (i, k))]  # A tile
    if xw_resident:
        # Full XW resident in VMEM for the whole grid (constant index_map =>
        # fetched once, not re-streamed per row-tile).
        in_specs.append(pl.BlockSpec((n, h), lambda i, k: (0, 0)))
    else:
        in_specs.append(pl.BlockSpec((tile_k, h), lambda i, k: (k, 0)))
    in_specs.append(pl.BlockSpec((1, h), lambda i, k: (0, 0)))        # bias
    args = [a_hat, xw, bias2d]
    if fuse_next:
        in_specs.append(pl.BlockSpec((h, h_out), lambda i, k: (0, 0)))
        args.append(w_next)
        if add_next_bias:
            in_specs.append(pl.BlockSpec((1, h_out), lambda i, k: (0, 0)))
            args.append(b_next)

    kernel = functools.partial(
        _agg_kernel, apply_relu=apply_relu, fuse_next=fuse_next,
        add_next_bias=add_next_bias, xw_resident=xw_resident, tile_k=tile_k)

    return pl.pallas_call(
        kernel,
        out_shape=jax.ShapeDtypeStruct((n, h_out), out_dtype),
        grid_spec=pltpu.PrefetchScalarGridSpec(
            num_scalar_prefetch=0,
            grid=(n // tile_m, n // tile_k),
            in_specs=in_specs,
            out_specs=pl.BlockSpec((tile_m, h_out), lambda i, k: (i, 0)),
            scratch_shapes=[pltpu.VMEM((tile_m, h), jnp.float32)],
        ),
        compiler_params=pltpu.CompilerParams(
            dimension_semantics=("parallel", "arbitrary"),
            vmem_limit_bytes=vmem_limit),
    )(*args)


# ------------------------------ model wrapper -------------------------------

def normalized_adjacency(edge_index, num_nodes):
    """Dense A_hat = D^{-1/2} (A + I) D^{-1/2}  (plain-JAX glue).

    Note: symmetrizes + dedups edges; PyG GCNConv consumes edge_index as-is.
    This is reference-semantics glue, not part of the kernels.
    """
    src, dst = edge_index[0], edge_index[1]
    a = jnp.zeros((num_nodes, num_nodes), jnp.float32)
    a = a.at[src, dst].set(1.0)
    a = a.at[dst, src].set(1.0)                       # treat as undirected
    a = a + jnp.eye(num_nodes, dtype=jnp.float32)     # self loops
    deg = a.sum(axis=1)
    d_inv_sqrt = jnp.where(deg > 0, 1.0 / jnp.sqrt(deg), 0.0)
    return a * d_inv_sqrt[:, None] * d_inv_sqrt[None, :]


def prepare_adjacency(a_hat, compute_dtype):
    """Pad + cast A_hat ONCE (outside the forward; A_hat is static across
    calls and layers).  Padded columns are zero so padded rows of h never
    contaminate real rows."""
    n = a_hat.shape[0]
    n_pad = _round_up(n, LANE)
    return _pad2(a_hat, n_pad, n_pad).astype(compute_dtype)


def init_params(key, in_channels, hidden_channels, num_layers, out_channels):
    """Deterministic Glorot-uniform-ish init for all layer weights."""
    params = {"convs": [], "lin": None}
    dims = [in_channels] + [hidden_channels] * num_layers
    for i in range(num_layers):
        key, kw = jax.random.split(key)
        fan_in, fan_out = dims[i], dims[i + 1]
        limit = jnp.sqrt(6.0 / (fan_in + fan_out))
        w = jax.random.uniform(kw, (fan_in, fan_out), jnp.float32, -limit, limit)
        b = jnp.zeros((fan_out,), jnp.float32)
        params["convs"].append((w, b))
    if out_channels is not None:
        key, kw = jax.random.split(key)
        limit = jnp.sqrt(6.0 / (hidden_channels + out_channels))
        w = jax.random.uniform(kw, (hidden_channels, out_channels),
                               jnp.float32, -limit, limit)
        b = jnp.zeros((out_channels,), jnp.float32)
        params["lin"] = (w, b)
    return params


def basic_gnn_forward(params, x, a_hat_padded, *, compute_dtype=jnp.float32):
    """Forward of BasicGNN with jk='last', norm=None, dropout=0 (eval mode).

    a_hat_padded: pre-padded / pre-cast normalized adjacency (prepare_adjacency).
    compute_dtype controls the MXU operand dtype on all generations (v5e's
    MXU consumes bf16 natively); accumulation, bias and ReLU stay f32.
    """
    n, c = x.shape
    n_pad = a_hat_padded.shape[0]
    assert a_hat_padded.shape == (n_pad, n_pad)
    assert n_pad % LANE == 0 and n_pad >= n

    vmem_limit = _vmem_limit_bytes()
    tile_m, tile_k = _pick_tiles(n_pad)
    in_bytes = jnp.dtype(compute_dtype).itemsize

    convs = params["convs"]
    lin = params["lin"]
    num_layers = len(convs)

    def pad_w(w):
        fi, fo = w.shape
        return _pad2(w, _round_up(fi, LANE), _round_up(fo, LANE)).astype(compute_dtype)

    def pad_b(b):
        fo = b.shape[0]
        return jnp.pad(b, (0, _round_up(fo, LANE) - fo)).reshape(1, -1).astype(jnp.float32)

    ws = [pad_w(w) for w, _ in convs]
    bs = [pad_b(b) for _, b in convs]
    w_lin = pad_w(lin[0]) if lin is not None else None
    b_lin = pad_b(lin[1]) if lin is not None else None

    # Layer 0's X@W is the only standalone feature transform; all later XW
    # (and the final linear head) are fused into aggregation epilogues.
    c_pad = _round_up(c, LANE)
    h0 = _pad2(x, n_pad, c_pad).astype(compute_dtype)
    xw = xw_matmul(h0, ws[0], tile_m=tile_m, out_dtype=compute_dtype,
                   vmem_limit=vmem_limit)

    # TODO(synk): for large sparse graphs, replace this dense O(N^2) path with
    # a CSR/block-sparse gather driven by PrefetchScalarGridSpec (row-pointer +
    # column-index scalar prefetch); on v7x also experiment with fp8(e4m3) for
    # the A_hat operand only.
    out = None
    for l in range(num_layers):
        h_cur = ws[l].shape[1]
        last_conv = (l == num_layers - 1)
        if not last_conv:
            h_out = ws[l + 1].shape[1]
            resident = _xw_resident_ok(n_pad, h_cur, h_out, tile_m, tile_k,
                                       in_bytes, vmem_limit)
            xw = gcn_aggregate(a_hat_padded, xw, bs[l],
                               tile_m=tile_m, tile_k=tile_k, apply_relu=True,
                               out_dtype=compute_dtype, xw_resident=resident,
                               vmem_limit=vmem_limit,
                               w_next=ws[l + 1])      # fused next-layer X@W
        elif lin is not None:
            h_out = w_lin.shape[1]
            resident = _xw_resident_ok(n_pad, h_cur, h_out, tile_m, tile_k,
                                       in_bytes, vmem_limit)
            out = gcn_aggregate(a_hat_padded, xw, bs[l],
                                tile_m=tile_m, tile_k=tile_k, apply_relu=True,
                                out_dtype=jnp.float32, xw_resident=resident,
                                vmem_limit=vmem_limit,
                                w_next=w_lin, b_next=b_lin)  # fused lin head
            fo = lin[0].shape[1]
        else:
            resident = _xw_resident_ok(n_pad, h_cur, h_cur, tile_m, tile_k,
                                       in_bytes, vmem_limit)
            out = gcn_aggregate(a_hat_padded, xw, bs[l],
                                tile_m=tile_m, tile_k=tile_k, apply_relu=True,
                                out_dtype=jnp.float32, xw_resident=resident,
                                vmem_limit=vmem_limit)
            fo = convs[-1][0].shape[1]
        # norm=None and dropout(p=0, eval) are no-ops; jk='last' keeps only h.

    return out[:n, :fo]


# ---------------------------------- main ------------------------------------

if __name__ == "__main__":
    num_nodes = 128
    in_channels = 16
    hidden_channels = 32
    num_layers = 2
    out_channels = 8

    key = jax.random.PRNGKey(0)
    k_x, k_e, k_p = jax.random.split(key, 3)

    x = jax.random.normal(k_x, (num_nodes, in_channels), jnp.float32)
    num_edges = 512
    edge_index = jax.random.randint(k_e, (2, num_edges), 0, num_nodes,
                                    dtype=jnp.int32)

    a_hat = normalized_adjacency(edge_index, num_nodes)
    params = init_params(k_p, in_channels, hidden_channels, num_layers,
                         out_channels)

    # Pad + cast A_hat once per operand dtype (static across calls/layers).
    a_p_f32 = prepare_adjacency(a_hat, jnp.float32)
    a_p_bf16 = prepare_adjacency(a_hat, jnp.bfloat16)

    # f32 path (tight numerical check).
    fwd_f32 = jax.jit(functools.partial(basic_gnn_forward,
                                        compute_dtype=jnp.float32))
    out = fwd_f32(params, x, a_p_f32)
    jax.block_until_ready(out)

    # plain-JAX reference at highest matmul precision
    hp = jax.lax.Precision.HIGHEST
    ref = x
    for (w, b) in params["convs"]:
        ref = jnp.maximum(
            jnp.dot(a_hat, jnp.dot(ref, w, precision=hp), precision=hp) + b, 0.0)
    ref = jnp.dot(ref, params["lin"][0], precision=hp) + params["lin"][1]

    assert out.shape == (num_nodes, out_channels)
    assert jnp.allclose(out, ref, atol=2e-3, rtol=2e-3), \
        float(jnp.max(jnp.abs(out - ref)))

    # bf16 MXU-operand path (valid on v5e/v6e/v7x); loose tolerance vs f32 ref.
    fwd_bf16 = jax.jit(functools.partial(basic_gnn_forward,
                                         compute_dtype=jnp.bfloat16))
    out_bf16 = fwd_bf16(params, x, a_p_bf16)
    jax.block_until_ready(out_bf16)
    assert jnp.allclose(out_bf16, ref, atol=1.5e-1, rtol=1.5e-1), \
        float(jnp.max(jnp.abs(out_bf16 - ref)))

    print("KERNEL_OK")
</pallas_src>

<mosaic_0001>
module attributes {stable_mosaic.version = 11 : i64} {
  func.func @_xw_kernel(%arg0: i32, %arg1: memref<128x128xf32, #tpu.memory_space<vmem>>, %arg2: memref<128x128xf32, #tpu.memory_space<vmem>>, %arg3: memref<128x128xf32, #tpu.memory_space<vmem>>) attributes {dimension_semantics = [#tpu.dimension_semantics<parallel>], iteration_bounds = array<i64: 1>, scalar_prefetch = 0 : i64, scratch_operands = 0 : i64, tpu.core_type = #tpu.core_type<tc>, window_params = [{transform_indices = @transform_0, window_bounds = array<i64: 128, 128>}, {pipeline_mode = #tpu.pipeline_mode<synchronous>, transform_indices = @transform_1, window_bounds = array<i64: 128, 128>}, {transform_indices = @transform_2, window_bounds = array<i64: 128, 128>}]} {
    %c0 = arith.constant 0 : index
    %c0_0 = arith.constant 0 : index
    %0 = vector.load %arg1[%c0, %c0_0] : memref<128x128xf32, #tpu.memory_space<vmem>>, vector<128x128xf32>
    %c0_1 = arith.constant 0 : index
    %c0_2 = arith.constant 0 : index
    %1 = vector.load %arg2[%c0_1, %c0_2] : memref<128x128xf32, #tpu.memory_space<vmem>>, vector<128x128xf32>
    %cst = arith.constant dense<0.000000e+00> : vector<128x128xf32>
    %2 = tpu.matmul %0, %1, %cst {dimension_numbers = #tpu.dot_dimension_numbers<[1], [0], [0], [1], [0, 0, 1, 1], [], []>} : vector<128x128xf32>, vector<128x128xf32>, vector<128x128xf32> -> vector<128x128xf32>
    %c0_3 = arith.constant 0 : index
    %c0_4 = arith.constant 0 : index
    %3 = vector.load %arg3[%c0_3, %c0_4] : memref<128x128xf32, #tpu.memory_space<vmem>>, vector<128x128xf32>
    tpu.vector_store %arg3[%c0_3, %c0_4], %2 {strides = array<i32>} : memref<128x128xf32, #tpu.memory_space<vmem>>, vector<128x128xf32>,
    return
  }
  func.func @transform_0(%arg0: i32) -> (i32, i32) {
    %c0_i32 = arith.constant 0 : i32
    %c0_i32_0 = arith.constant 0 : i32
    return %arg0, %c0_i32 : i32, i32
  }
  func.func @transform_1(%arg0: i32) -> (i32, i32) {
    %c0_i32 = arith.constant 0 : i32
    %c0_i32_0 = arith.constant 0 : i32
    %c0_i32_1 = arith.constant 0 : i32
    return %c0_i32, %c0_i32_0 : i32, i32
  }
  func.func @transform_2(%arg0: i32) -> (i32, i32) {
    %c0_i32 = arith.constant 0 : i32
    %c0_i32_0 = arith.constant 0 : i32
    return %arg0, %c0_i32 : i32, i32
  }
}

module attributes {stable_mosaic.version = 11 : i64} {
  func.func @_agg_kernel(%arg0: i32, %arg1: i32, %arg2: memref<128x128xf32, #tpu.memory_space<vmem>>, %arg3: memref<128x128xf32, #tpu.memory_space<vmem>>, %arg4: memref<1x128xf32, #tpu.memory_space<vmem>>, %arg5: memref<128x128xf32, #tpu.memory_space<vmem>>, %arg6: memref<128x128xf32, #tpu.memory_space<vmem>>, %arg7: memref<128x128xf32, #tpu.memory_space<vmem>>) attributes {dimension_semantics = [#tpu.dimension_semantics<parallel>, #tpu.dimension_semantics<arbitrary>], iteration_bounds = array<i64: 1, 1>, scalar_prefetch = 0 : i64, scratch_operands = 1 : i64, tpu.core_type = #tpu.core_type<tc>, window_params = [{transform_indices = @transform_0, window_bounds = array<i64: 128, 128>}, {pipeline_mode = #tpu.pipeline_mode<synchronous>, transform_indices = @transform_1, window_bounds = array<i64: 128, 128>}, {pipeline_mode = #tpu.pipeline_mode<synchronous>, transform_indices = @transform_2, window_bounds = array<i64: 1, 128>}, {pipeline_mode = #tpu.pipeline_mode<synchronous>, transform_indices = @transform_3, window_bounds = array<i64: 128, 128>}, {transform_indices = @transform_4, window_bounds = array<i64: 128, 128>}]} {
    %c0_i32 = arith.constant 0 : i32
    %0 = arith.cmpi eq, %arg1, %c0_i32 : i32
    %1 = arith.extui %0 : i1 to i32
    %c0_i32_0 = arith.constant 0 : i32
    %2 = arith.cmpi ne, %1, %c0_i32_0 : i32
    scf.if %2 {
      %c0_9 = arith.constant 0 : index
      %c0_10 = arith.constant 0 : index
      %15 = vector.load %arg4[%c0_9, %c0_10] : memref<1x128xf32, #tpu.memory_space<vmem>>, vector<1x128xf32>
      %16 = vector.shape_cast %15 : vector<1x128xf32> to vector<1x128xf32>
      %17 = vector.broadcast %16 : vector<1x128xf32> to vector<128x128xf32>
      %c0_11 = arith.constant 0 : index
      %c0_12 = arith.constant 0 : index
      %18 = vector.load %arg7[%c0_11, %c0_12] : memref<128x128xf32, #tpu.memory_space<vmem>>, vector<128x128xf32>
      tpu.vector_store %arg7[%c0_11, %c0_12], %17 {strides = array<i32>} : memref<128x128xf32, #tpu.memory_space<vmem>>, vector<128x128xf32>,
    } else {
    }
    %c128_i32 = arith.constant 128 : i32
    %3 = arith.muli %arg1, %c128_i32 : i32
    %4 = tpu.assume_multiple %3, 128 : i32
    %5 = arith.index_cast %4 : i32 to index
    %c0 = arith.constant 0 : index
    %6 = vector.load %arg3[%5, %c0] : memref<128x128xf32, #tpu.memory_space<vmem>>, vector<128x128xf32>
    %c0_1 = arith.constant 0 : index
    %c0_2 = arith.constant 0 : index
    %7 = vector.load %arg7[%c0_1, %c0_2] : memref<128x128xf32, #tpu.memory_space<vmem>>, vector<128x128xf32>
    %c0_3 = arith.constant 0 : index
    %c0_4 = arith.constant 0 : index
    %8 = vector.load %arg2[%c0_3, %c0_4] : memref<128x128xf32, #tpu.memory_space<vmem>>, vector<128x128xf32>
    %cst = arith.constant dense<0.000000e+00> : vector<128x128xf32>
    %9 = tpu.matmul %8, %6, %cst {dimension_numbers = #tpu.dot_dimension_numbers<[1], [0], [0], [1], [0, 0, 1, 1], [], []>} : vector<128x128xf32>, vector<128x128xf32>, vector<128x128xf32> -> vector<128x128xf32>
    %10 = arith.addf %7, %9 : vector<128x128xf32>
    %c0_5 = arith.constant 0 : index
    %c0_6 = arith.constant 0 : index
    %11 = vector.load %arg7[%c0_5, %c0_6] : memref<128x128xf32, #tpu.memory_space<vmem>>, vector<128x128xf32>
    tpu.vector_store %arg7[%c0_5, %c0_6], %10 {strides = array<i32>} : memref<128x128xf32, #tpu.memory_space<vmem>>, vector<128x128xf32>,
    %c0_i32_7 = arith.constant 0 : i32
    %12 = arith.cmpi eq, %arg1, %c0_i32_7 : i32
    %13 = arith.extui %12 : i1 to i32
    %c0_i32_8 = arith.constant 0 : i32
    %14 = arith.cmpi ne, %13, %c0_i32_8 : i32
    scf.if %14 {
      %c0_9 = arith.constant 0 : index
      %c0_10 = arith.constant 0 : index
      %15 = vector.load %arg7[%c0_9, %c0_10] : memref<128x128xf32, #tpu.memory_space<vmem>>, vector<128x128xf32>
      %cst_11 = arith.constant 0.000000e+00 : f32
      %16 = vector.broadcast %cst_11 : f32 to vector<128x128xf32>
      %17 = arith.maximumf %15, %16 : vector<128x128xf32>
      %c0_12 = arith.constant 0 : index
      %c0_13 = arith.constant 0 : index
      %18 = vector.load %arg5[%c0_12, %c0_13] : memref<128x128xf32, #tpu.memory_space<vmem>>, vector<128x128xf32>
      %cst_14 = arith.constant dense<0.000000e+00> : vector<128x128xf32>
      %19 = tpu.matmul %17, %18, %cst_14 {dimension_numbers = #tpu.dot_dimension_numbers<[1], [0], [0], [1], [0, 0, 1, 1], [], []>} : vector<128x128xf32>, vector<128x128xf32>, vector<128x128xf32> -> vector<128x128xf32>
      %c0_15 = arith.constant 0 : index
      %c0_16 = arith.constant 0 : index
      %20 = vector.load %arg6[%c0_15, %c0_16] : memref<128x128xf32, #tpu.memory_space<vmem>>, vector<128x128xf32>
      tpu.vector_store %arg6[%c0_15, %c0_16], %19 {strides = array<i32>} : memref<128x128xf32, #tpu.memory_space<vmem>>, vector<128x128xf32>,
    } else {
    }
    return
  }
  func.func @transform_0(%arg0: i32, %arg1: i32) -> (i32, i32) {
    %c0_i32 = arith.constant 0 : i32
    return %arg0, %arg1 : i32, i32
  }
  func.func @transform_1(%arg0: i32, %arg1: i32) -> (i32, i32) {
    %c0_i32 = arith.constant 0 : i32
    %c0_i32_0 = arith.constant 0 : i32
    %c0_i32_1 = arith.constant 0 : i32
    return %c0_i32, %c0_i32_0 : i32, i32
  }
  func.func @transform_2(%arg0: i32, %arg1: i32) -> (i32, i32) {
    %c0_i32 = arith.constant 0 : i32
    %c0_i32_0 = arith.constant 0 : i32
    %c0_i32_1 = arith.constant 0 : i32
    return %c0_i32, %c0_i32_0 : i32, i32
  }
  func.func @transform_3(%arg0: i32, %arg1: i32) -> (i32, i32) {
    %c0_i32 = arith.constant 0 : i32
    %c0_i32_0 = arith.constant 0 : i32
    %c0_i32_1 = arith.constant 0 : i32
    return %c0_i32, %c0_i32_0 : i32, i32
  }
  func.func @transform_4(%arg0: i32, %arg1: i32) -> (i32, i32) {
    %c0_i32 = arith.constant 0 : i32
    %c0_i32_0 = arith.constant 0 : i32
    return %arg0, %c0_i32 : i32, i32
  }
}

module attributes {stable_mosaic.version = 11 : i64} {
  func.func @_agg_kernel(%arg0: i32, %arg1: i32, %arg2: memref<128x128xf32, #tpu.memory_space<vmem>>, %arg3: memref<128x128xf32, #tpu.memory_space<vmem>>, %arg4: memref<1x128xf32, #tpu.memory_space<vmem>>, %arg5: memref<128x128xf32, #tpu.memory_space<vmem>>, %arg6: memref<1x128xf32, #tpu.memory_space<vmem>>, %arg7: memref<128x128xf32, #tpu.memory_space<vmem>>, %arg8: memref<128x128xf32, #tpu.memory_space<vmem>>) attributes {dimension_semantics = [#tpu.dimension_semantics<parallel>, #tpu.dimension_semantics<arbitrary>], iteration_bounds = array<i64: 1, 1>, scalar_prefetch = 0 : i64, scratch_operands = 1 : i64, tpu.core_type = #tpu.core_type<tc>, window_params = [{transform_indices = @transform_0, window_bounds = array<i64: 128, 128>}, {pipeline_mode = #tpu.pipeline_mode<synchronous>, transform_indices = @transform_1, window_bounds = array<i64: 128, 128>}, {pipeline_mode = #tpu.pipeline_mode<synchronous>, transform_indices = @transform_2, window_bounds = array<i64: 1, 128>}, {pipeline_mode = #tpu.pipeline_mode<synchronous>, transform_indices = @transform_3, window_bounds = array<i64: 128, 128>}, {pipeline_mode = #tpu.pipeline_mode<synchronous>, transform_indices = @transform_4, window_bounds = array<i64: 1, 128>}, {transform_indices = @transform_5, window_bounds = array<i64: 128, 128>}]} {
    %c0_i32 = arith.constant 0 : i32
    %0 = arith.cmpi eq, %arg1, %c0_i32 : i32
    %1 = arith.extui %0 : i1 to i32
    %c0_i32_0 = arith.constant 0 : i32
    %2 = arith.cmpi ne, %1, %c0_i32_0 : i32
    scf.if %2 {
      %c0_9 = arith.constant 0 : index
      %c0_10 = arith.constant 0 : index
      %15 = vector.load %arg4[%c0_9, %c0_10] : memref<1x128xf32, #tpu.memory_space<vmem>>, vector<1x128xf32>
      %16 = vector.shape_cast %15 : vector<1x128xf32> to vector<1x128xf32>
      %17 = vector.broadcast %16 : vector<1x128xf32> to vector<128x128xf32>
      %c0_11 = arith.constant 0 : index
      %c0_12 = arith.constant 0 : index
      %18 = vector.load %arg8[%c0_11, %c0_12] : memref<128x128xf32, #tpu.memory_space<vmem>>, vector<128x128xf32>
      tpu.vector_store %arg8[%c0_11, %c0_12], %17 {strides = array<i32>} : memref<128x128xf32, #tpu.memory_space<vmem>>, vector<128x128xf32>,
    } else {
    }
    %c128_i32 = arith.constant 128 : i32
    %3 = arith.muli %arg1, %c128_i32 : i32
    %4 = tpu.assume_multiple %3, 128 : i32
    %5 = arith.index_cast %4 : i32 to index
    %c0 = arith.constant 0 : index
    %6 = vector.load %arg3[%5, %c0] : memref<128x128xf32, #tpu.memory_space<vmem>>, vector<128x128xf32>
    %c0_1 = arith.constant 0 : index
    %c0_2 = arith.constant 0 : index
    %7 = vector.load %arg8[%c0_1, %c0_2] : memref<128x128xf32, #tpu.memory_space<vmem>>, vector<128x128xf32>
    %c0_3 = arith.constant 0 : index
    %c0_4 = arith.constant 0 : index
    %8 = vector.load %arg2[%c0_3, %c0_4] : memref<128x128xf32, #tpu.memory_space<vmem>>, vector<128x128xf32>
    %cst = arith.constant dense<0.000000e+00> : vector<128x128xf32>
    %9 = tpu.matmul %8, %6, %cst {dimension_numbers = #tpu.dot_dimension_numbers<[1], [0], [0], [1], [0, 0, 1, 1], [], []>} : vector<128x128xf32>, vector<128x128xf32>, vector<128x128xf32> -> vector<128x128xf32>
    %10 = arith.addf %7, %9 : vector<128x128xf32>
    %c0_5 = arith.constant 0 : index
    %c0_6 = arith.constant 0 : index
    %11 = vector.load %arg8[%c0_5, %c0_6] : memref<128x128xf32, #tpu.memory_space<vmem>>, vector<128x128xf32>
    tpu.vector_store %arg8[%c0_5, %c0_6], %10 {strides = array<i32>} : memref<128x128xf32, #tpu.memory_space<vmem>>, vector<128x128xf32>,
    %c0_i32_7 = arith.constant 0 : i32
    %12 = arith.cmpi eq, %arg1, %c0_i32_7 : i32
    %13 = arith.extui %12 : i1 to i32
    %c0_i32_8 = arith.constant 0 : i32
    %14 = arith.cmpi ne, %13, %c0_i32_8 : i32
    scf.if %14 {
      %c0_9 = arith.constant 0 : index
      %c0_10 = arith.constant 0 : index
      %15 = vector.load %arg8[%c0_9, %c0_10] : memref<128x128xf32, #tpu.memory_space<vmem>>, vector<128x128xf32>
      %cst_11 = arith.constant 0.000000e+00 : f32
      %16 = vector.broadcast %cst_11 : f32 to vector<128x128xf32>
      %17 = arith.maximumf %15, %16 : vector<128x128xf32>
      %c0_12 = arith.constant 0 : index
      %c0_13 = arith.constant 0 : index
      %18 = vector.load %arg5[%c0_12, %c0_13] : memref<128x128xf32, #tpu.memory_space<vmem>>, vector<128x128xf32>
      %cst_14 = arith.constant dense<0.000000e+00> : vector<128x128xf32>
      %19 = tpu.matmul %17, %18, %cst_14 {dimension_numbers = #tpu.dot_dimension_numbers<[1], [0], [0], [1], [0, 0, 1, 1], [], []>} : vector<128x128xf32>, vector<128x128xf32>, vector<128x128xf32> -> vector<128x128xf32>
      %c0_15 = arith.constant 0 : index
      %c0_16 = arith.constant 0 : index
      %20 = vector.load %arg6[%c0_15, %c0_16] : memref<1x128xf32, #tpu.memory_space<vmem>>, vector<1x128xf32>
      %21 = vector.broadcast %20 : vector<1x128xf32> to vector<128x128xf32>
      %22 = arith.addf %19, %21 : vector<128x128xf32>
      %c0_17 = arith.constant 0 : index
      %c0_18 = arith.constant 0 : index
      %23 = vector.load %arg7[%c0_17, %c0_18] : memref<128x128xf32, #tpu.memory_space<vmem>>, vector<128x128xf32>
      tpu.vector_store %arg7[%c0_17, %c0_18], %22 {strides = array<i32>} : memref<128x128xf32, #tpu.memory_space<vmem>>, vector<128x128xf32>,
    } else {
    }
    return
  }
  func.func @transform_0(%arg0: i32, %arg1: i32) -> (i32, i32) {
    %c0_i32 = arith.constant 0 : i32
    return %arg0, %arg1 : i32, i32
  }
  func.func @transform_1(%arg0: i32, %arg1: i32) -> (i32, i32) {
    %c0_i32 = arith.constant 0 : i32
    %c0_i32_0 = arith.constant 0 : i32
    %c0_i32_1 = arith.constant 0 : i32
    return %c0_i32, %c0_i32_0 : i32, i32
  }
  func.func @transform_2(%arg0: i32, %arg1: i32) -> (i32, i32) {
    %c0_i32 = arith.constant 0 : i32
    %c0_i32_0 = arith.constant 0 : i32
    %c0_i32_1 = arith.constant 0 : i32
    return %c0_i32, %c0_i32_0 : i32, i32
  }
  func.func @transform_3(%arg0: i32, %arg1: i32) -> (i32, i32) {
    %c0_i32 = arith.constant 0 : i32
    %c0_i32_0 = arith.constant 0 : i32
    %c0_i32_1 = arith.constant 0 : i32
    return %c0_i32, %c0_i32_0 : i32, i32
  }
  func.func @transform_4(%arg0: i32, %arg1: i32) -> (i32, i32) {
    %c0_i32 = arith.constant 0 : i32
    %c0_i32_0 = arith.constant 0 : i32
    %c0_i32_1 = arith.constant 0 : i32
    return %c0_i32, %c0_i32_0 : i32, i32
  }
  func.func @transform_5(%arg0: i32, %arg1: i32) -> (i32, i32) {
    %c0_i32 = arith.constant 0 : i32
    %c0_i32_0 = arith.constant 0 : i32
    return %arg0, %c0_i32 : i32, i32
  }
}

</mosaic_0001>

<llo_original>
// kernel: basic_gnn_forward.3
$region0: #{basic_gnn_forward.3}
  #allocation0 [shape = 'u32[]', space=smem, size = 0x4, offset = 0x4, fixed_abs, tag = 'smem constant byte address 0x4 - core index']
  #allocation1 [shape = 'u32[144,128]{1,0:T(1,128)}', space=vmem, size = 0x12000, scoped, tag = 'internal scratch']
  %s0 = inlined_call_operand.vmem [shape: f32[128,128], index: 0, kind: input, shape index: {}]
  %s1 = inlined_call_operand.vmem [shape: f32[128,128], index: 1, kind: input, shape index: {}]
  %s2 = inlined_call_operand.vmem [shape: f32[128,128], index: 2, kind: output, shape index: {}]
  %s3 = sld [smem:[#allocation0]]
  $region18: #{basic_gnn_forward.3} parent=0
    _
  %s5 = ssub.s32 1, %s3
  %s6 = scalar_select 0, %s5, %s3
  // Predicated region
  $region2: #{basic_gnn_forward.3} parent=0 // pred_check
    _
  $region3: #{basic_gnn_forward.3} parent=0 // pred_check_branch
    %8 = sbr.rel (0) target = $region5
  $region4: #{basic_gnn_forward.3} parent=0 // pred_region
    _
  $region5: #{basic_gnn_forward.3} parent=0 // pred_fallthru
    _
  // Predicated region
  $region6: #{basic_gnn_forward.3} parent=0 // pred_check
    _
  $region7: #{basic_gnn_forward.3} parent=0 // pred_check_branch
    %10 = sbr.rel (0) target = $region9
  $region8: #{basic_gnn_forward.3} parent=0 // pred_region
    _
  $region9: #{basic_gnn_forward.3} parent=0 // pred_fallthru
    _
  %v11 = vld [vmem:[%s0] sm:$0xff]
  %v12 = vld [vmem:[%s0 + $0x8] sm:$0xff]
  %v13 = vld [vmem:[%s0 + $0x10] sm:$0xff]
  %v14 = vld [vmem:[%s0 + $0x18] sm:$0xff]
  %v15 = vld [vmem:[%s0 + $0x20] sm:$0xff]
  %v16 = vld [vmem:[%s0 + $0x28] sm:$0xff]
  %v17 = vld [vmem:[%s0 + $0x30] sm:$0xff]
  %v18 = vld [vmem:[%s0 + $0x38] sm:$0xff]
  %v19 = vld [vmem:[%s0 + $0x40] sm:$0xff]
  %v20 = vld [vmem:[%s0 + $0x48] sm:$0xff]
  %v21 = vld [vmem:[%s0 + $0x50] sm:$0xff]
  %v22 = vld [vmem:[%s0 + $0x58] sm:$0xff]
  %v23 = vld [vmem:[%s0 + $0x60] sm:$0xff]
  %v24 = vld [vmem:[%s0 + $0x68] sm:$0xff]
  %v25 = vld [vmem:[%s0 + $0x70] sm:$0xff]
  %v26 = vld [vmem:[%s0 + $0x78] sm:$0xff]
  %v27 = vld [vmem:[%s1] sm:$0xff]
  %v28 = vld [vmem:[%s1 + $0x8] sm:$0xff]
  %v29 = vld [vmem:[%s1 + $0x10] sm:$0xff]
  %v30 = vld [vmem:[%s1 + $0x18] sm:$0xff]
  %v31 = vld [vmem:[%s1 + $0x20] sm:$0xff]
  %v32 = vld [vmem:[%s1 + $0x28] sm:$0xff]
  %v33 = vld [vmem:[%s1 + $0x30] sm:$0xff]
  %v34 = vld [vmem:[%s1 + $0x38] sm:$0xff]
  %v35 = vld [vmem:[%s1 + $0x40] sm:$0xff]
  %v36 = vld [vmem:[%s1 + $0x48] sm:$0xff]
  %v37 = vld [vmem:[%s1 + $0x50] sm:$0xff]
  %v38 = vld [vmem:[%s1 + $0x58] sm:$0xff]
  %v39 = vld [vmem:[%s1 + $0x60] sm:$0xff]
  %v40 = vld [vmem:[%s1 + $0x68] sm:$0xff]
  %v41 = vld [vmem:[%s1 + $0x70] sm:$0xff]
  %v42 = vld [vmem:[%s1 + $0x78] sm:$0xff]
  %43 = vmatprep.subr.mxu0 0.0
  %44 = vmatpush1.msra.mxu0 %v27
  %45 = vmatprep.subr.mxu0 0.0
  %46 = vmatpush1.msra.mxu0 %v28
  %47 = vmatprep.subr.mxu0 0.0
  %48 = vmatpush1.msra.mxu0 %v29
  %49 = vmatprep.subr.mxu0 0.0
  %50 = vmatpush1.msra.mxu0 %v30
  %51 = vmatprep.subr.mxu0 0.0
  %52 = vmatpush1.msra.mxu0 %v31
  %53 = vmatprep.subr.mxu0 0.0
  %54 = vmatpush1.msra.mxu0 %v32
  %55 = vmatprep.subr.mxu0 0.0
  %56 = vmatpush1.msra.mxu0 %v33
  %57 = vmatprep.subr.mxu0 0.0
  %58 = vmatpush1.msra.mxu0 %v34
  %59 = vmatprep.subr.mxu0 0.0
  %60 = vmatpush1.msra.mxu0 %v35
  %61 = vmatprep.subr.mxu0 0.0
  %62 = vmatpush1.msra.mxu0 %v36
  %63 = vmatprep.subr.mxu0 0.0
  %64 = vmatpush1.msra.mxu0 %v37
  %65 = vmatprep.subr.mxu0 0.0
  %66 = vmatpush1.msra.mxu0 %v38
  %67 = vmatprep.subr.mxu0 0.0
  %68 = vmatpush1.msra.mxu0 %v39
  %69 = vmatprep.subr.mxu0 0.0
  %70 = vmatpush1.msra.mxu0 %v40
  %71 = vmatprep.subr.mxu0 0.0
  %72 = vmatpush1.msra.mxu0 %v41
  %73 = vmatprep.subr.mxu0 0.0
  %74 = vmatpush1.msra.mxu0 %v42
  %75 = vmatprep.subr.mxu0 0.0
  %76 = vmatpush1.msra.mxu0 0.0
  %77 = vmatprep.subr.mxu0 0.0
  %78 = vmatpush1.msra.mxu0 0.0
  %79 = vmatprep.subr.mxu0 0.0
  %80 = vmatpush1.msra.mxu0 0.0
  %81 = vmatprep.subr.mxu0 0.0
  %82 = vmatpush1.msra.mxu0 0.0
  %83 = vmatprep.subr.mxu0 0.0
  %84 = vmatpush1.msra.mxu0 0.0
  %85 = vmatprep.subr.mxu0 0.0
  %86 = vmatpush1.msra.mxu0 0.0
  %87 = vmatprep.subr.mxu0 0.0
  %88 = vmatpush1.msra.mxu0 0.0
  %89 = vmatprep.subr.mxu0 0.0
  %90 = vmatpush1.msra.mxu0 0.0
  %91 = vmatprep.subr.mxu0 0.0
  %92 = vmatpush1.msra.mxu0 0.0
  %93 = vmatprep.subr.mxu0 0.0
  %94 = vmatpush1.msra.mxu0 0.0
  %95 = vmatprep.subr.mxu0 0.0
  %96 = vmatpush1.msra.mxu0 0.0
  %97 = vmatprep.subr.mxu0 0.0
  %98 = vmatpush1.msra.mxu0 0.0
  %99 = vmatprep.subr.mxu0 0.0
  %100 = vmatpush1.msra.mxu0 0.0
  %101 = vmatprep.subr.mxu0 0.0
  %102 = vmatpush1.msra.mxu0 0.0
  %103 = vmatprep.subr.mxu0 0.0
  %104 = vmatpush1.msra.mxu0 0.0
  %105 = vmatprep.subr.mxu0 0.0
  %106 = vmatpush1.msra.mxu0 0.0
  %107 = vmatprep.mubr.f32.mxu0 0.0
  %108 = vmatmul.mubr.f32.gmra.mrb[0].mxu0 %v11
  %v109 = vpop.f32.mrb[0].mxu0
  %v110 = vadd.f32 0.0, %v109
  %v111 = vpop.f32.mrb[0].mxu0
  %112 = vmatprep.mubr.f32.mxu0 0.0
  %113 = vmatmul.mubr.f32.gmra.mrb[0].mxu0 %v12
  %v114 = vpop.f32.mrb[0].mxu0
  %v115 = vadd.f32 0.0, %v114
  %v116 = vpop.f32.mrb[0].mxu0
  %117 = vmatprep.mubr.f32.mxu0 0.0
  %118 = vmatmul.mubr.f32.gmra.mrb[0].mxu0 %v13
  %v119 = vpop.f32.mrb[0].mxu0
  %v120 = vadd.f32 0.0, %v119
  %v121 = vpop.f32.mrb[0].mxu0
  %122 = vmatprep.mubr.f32.mxu0 0.0
  %123 = vmatmul.mubr.f32.gmra.mrb[0].mxu0 %v14
  %v124 = vpop.f32.mrb[0].mxu0
  %v125 = vadd.f32 0.0, %v124
  %v126 = vpop.f32.mrb[0].mxu0
  %127 = vmatprep.mubr.f32.mxu0 0.0
  %128 = vmatmul.mubr.f32.gmra.mrb[0].mxu0 %v15
  %v129 = vpop.f32.mrb[0].mxu0
  %v130 = vadd.f32 0.0, %v129
  %v131 = vpop.f32.mrb[0].mxu0
  %132 = vmatprep.mubr.f32.mxu0 0.0
  %133 = vmatmul.mubr.f32.gmra.mrb[0].mxu0 %v16
  %v134 = vpop.f32.mrb[0].mxu0
  %v135 = vadd.f32 0.0, %v134
  %v136 = vpop.f32.mrb[0].mxu0
  %137 = vmatprep.mubr.f32.mxu0 0.0
  %138 = vmatmul.mubr.f32.gmra.mrb[0].mxu0 %v17
  %v139 = vpop.f32.mrb[0].mxu0
  %v140 = vadd.f32 0.0, %v139
  %v141 = vpop.f32.mrb[0].mxu0
  %142 = vmatprep.mubr.f32.mxu0 0.0
  %143 = vmatmul.mubr.f32.gmra.mrb[0].mxu0 %v18
  %v144 = vpop.f32.mrb[0].mxu0
  %v145 = vadd.f32 0.0, %v144
  %v146 = vpop.f32.mrb[0].mxu0
  %147 = vmatprep.mubr.f32.mxu0 0.0
  %148 = vmatmul.mubr.f32.gmra.mrb[0].mxu0 %v19
  %v149 = vpop.f32.mrb[0].mxu0
  %v150 = vadd.f32 0.0, %v149
  %v151 = vpop.f32.mrb[0].mxu0
  %152 = vmatprep.mubr.f32.mxu0 0.0
  %153 = vmatmul.mubr.f32.gmra.mrb[0].mxu0 %v20
  %v154 = vpop.f32.mrb[0].mxu0
  %v155 = vadd.f32 0.0, %v154
  %v156 = vpop.f32.mrb[0].mxu0
  %157 = vmatprep.mubr.f32.mxu0 0.0
  %158 = vmatmul.mubr.f32.gmra.mrb[0].mxu0 %v21
  %v159 = vpop.f32.mrb[0].mxu0
  %v160 = vadd.f32 0.0, %v159
  %v161 = vpop.f32.mrb[0].mxu0
  %162 = vmatprep.mubr.f32.mxu0 0.0
  %163 = vmatmul.mubr.f32.gmra.mrb[0].mxu0 %v22
  %v164 = vpop.f32.mrb[0].mxu0
  %v165 = vadd.f32 0.0, %v164
  %v166 = vpop.f32.mrb[0].mxu0
  %167 = vmatprep.mubr.f32.mxu0 0.0
  %168 = vmatmul.mubr.f32.gmra.mrb[0].mxu0 %v23
  %v169 = vpop.f32.mrb[0].mxu0
  %v170 = vadd.f32 0.0, %v169
  %v171 = vpop.f32.mrb[0].mxu0
  %172 = vmatprep.mubr.f32.mxu0 0.0
  %173 = vmatmul.mubr.f32.gmra.mrb[0].mxu0 %v24
  %v174 = vpop.f32.mrb[0].mxu0
  %v175 = vadd.f32 0.0, %v174
  %v176 = vpop.f32.mrb[0].mxu0
  %177 = vmatprep.mubr.f32.mxu0 0.0
  %178 = vmatmul.mubr.f32.gmra.mrb[0].mxu0 %v25
  %v179 = vpop.f32.mrb[0].mxu0
  %v180 = vadd.f32 0.0, %v179
  %v181 = vpop.f32.mrb[0].mxu0
  %182 = vmatprep.mubr.f32.mxu0 0.0
  %183 = vmatmul.mubr.f32.gmra.mrb[0].mxu0 %v26
  %v184 = vpop.f32.mrb[0].mxu0
  %v185 = vadd.f32 0.0, %v184
  %v186 = vpop.f32.mrb[0].mxu0
  %187 = vdwg.mxu0
  %188 = vst [vmem:[%s2] sm:$0xff] %v110
  %189 = vst [vmem:[%s2 + $0x8] sm:$0xff] %v115
  %190 = vst [vmem:[%s2 + $0x10] sm:$0xff] %v120
  %191 = vst [vmem:[%s2 + $0x18] sm:$0xff] %v125
  %192 = vst [vmem:[%s2 + $0x20] sm:$0xff] %v130
  %193 = vst [vmem:[%s2 + $0x28] sm:$0xff] %v135
  %194 = vst [vmem:[%s2 + $0x30] sm:$0xff] %v140
  %195 = vst [vmem:[%s2 + $0x38] sm:$0xff] %v145
  %196 = vst [vmem:[%s2 + $0x40] sm:$0xff] %v150
  %197 = vst [vmem:[%s2 + $0x48] sm:$0xff] %v155
  %198 = vst [vmem:[%s2 + $0x50] sm:$0xff] %v160
  %199 = vst [vmem:[%s2 + $0x58] sm:$0xff] %v165
  %200 = vst [vmem:[%s2 + $0x60] sm:$0xff] %v170
  %201 = vst [vmem:[%s2 + $0x68] sm:$0xff] %v175
  %202 = vst [vmem:[%s2 + $0x70] sm:$0xff] %v180
  %203 = vst [vmem:[%s2 + $0x78] sm:$0xff] %v185
  // Predicated region
  $region10: #{basic_gnn_forward.3} parent=0 // pred_check
    _
  $region11: #{basic_gnn_forward.3} parent=0 // pred_check_branch
    %205 = sbr.rel (0) target = $region13
  $region12: #{basic_gnn_forward.3} parent=0 // pred_region
    _
  $region13: #{basic_gnn_forward.3} parent=0 // pred_fallthru
    _
  // Predicated region
  $region14: #{basic_gnn_forward.3} parent=0 // pred_check
    _
  $region15: #{basic_gnn_forward.3} parent=0 // pred_check_branch
    %207 = sbr.rel (0) target = $region17
  $region16: #{basic_gnn_forward.3} parent=0 // pred_region
    _
  $region17: #{basic_gnn_forward.3} parent=0 // pred_fallthru
    _

// kernel: basic_gnn_forward.4
$region0: #{basic_gnn_forward.4}
  #allocation0 [shape = 'u32[]', space=smem, size = 0x4, offset = 0x4, fixed_abs, tag = 'smem constant byte address 0x4 - core index']
  #allocation1 [shape = 'u32[144,128]{1,0:T(1,128)}', space=vmem, size = 0x12000, scoped, tag = 'internal scratch']
  #allocation2 [shape = 'f32[128,128]{1,0:T(8,128)}', space=vmem, size = 0x10000, scoped, tag = 'scratch operand']
  %s0 = inlined_call_operand.vmem [shape: f32[128,128], index: 0, kind: input, shape index: {}]
  %s1 = inlined_call_operand.vmem [shape: f32[128,128], index: 1, kind: input, shape index: {}]
  %s2 = inlined_call_operand.vmem [shape: f32[1,128], index: 2, kind: input, shape index: {}]
  %s3 = inlined_call_operand.vmem [shape: f32[128,128], index: 3, kind: input, shape index: {}]
  %s4 = inlined_call_operand.vmem [shape: f32[128,128], index: 4, kind: output, shape index: {}]
  %s5 = sld [smem:[#allocation0]]
  $region34: #{basic_gnn_forward.4} parent=0
    _
  %s7 = ssub.s32 1, %s5
  %s8 = scalar_select 0, %s7, %s5
  // Predicated region
  $region2: #{basic_gnn_forward.4} parent=0 // pred_check
    _
  $region3: #{basic_gnn_forward.4} parent=0 // pred_check_branch
    %10 = sbr.rel (0) target = $region5
  $region4: #{basic_gnn_forward.4} parent=0 // pred_region
    _
  $region5: #{basic_gnn_forward.4} parent=0 // pred_fallthru
    _
  // Predicated region
  $region6: #{basic_gnn_forward.4} parent=0 // pred_check
    _
  $region7: #{basic_gnn_forward.4} parent=0 // pred_check_branch
    %12 = sbr.rel (0) target = $region9
  $region8: #{basic_gnn_forward.4} parent=0 // pred_region
    _
  $region9: #{basic_gnn_forward.4} parent=0 // pred_fallthru
    _
  // Predicated region
  $region10: #{basic_gnn_forward.4} parent=0 // pred_check
    _
  $region11: #{basic_gnn_forward.4} parent=0 // pred_check_branch
    %14 = sbr.rel (0) target = $region13
  $region12: #{basic_gnn_forward.4} parent=0 // pred_region
    _
  $region13: #{basic_gnn_forward.4} parent=0 // pred_fallthru
    _
  // Predicated region
  $region14: #{basic_gnn_forward.4} parent=0 // pred_check
    _
  $region15: #{basic_gnn_forward.4} parent=0 // pred_check_branch
    %16 = sbr.rel (0) target = $region17
  $region16: #{basic_gnn_forward.4} parent=0 // pred_region
    _
  $region17: #{basic_gnn_forward.4} parent=0 // pred_fallthru
    _
  %p17 = scmp.eq.s32.totalorder 0, 0
  // Predicated region
  $region18: #{basic_gnn_forward.4} parent=0 // pred_check
    %p18 = pneg %p17
  $region19: #{basic_gnn_forward.4} parent=0 // pred_check_branch
    %20 = sbr.rel (%p18) target = $region21
  $region20: #{basic_gnn_forward.4} parent=0 // pred_region
    %v21 = vld [vmem:[%s2] sm:$0x1]
    %v23 = vlaneseq
    %v24 = vshrl.u32 %v23, 7
    %v25 = vsub.s32 0, %v24
    %v26 = vrot.slane %v21, %v25
    %28 = vst [vmem:[#allocation2] sm:$0xff] %v26
    %29 = vst [vmem:[#allocation2 + $0x8] sm:$0xff] %v26
    %30 = vst [vmem:[#allocation2 + $0x10] sm:$0xff] %v26
    %31 = vst [vmem:[#allocation2 + $0x18] sm:$0xff] %v26
    %32 = vst [vmem:[#allocation2 + $0x20] sm:$0xff] %v26
    %33 = vst [vmem:[#allocation2 + $0x28] sm:$0xff] %v26
    %34 = vst [vmem:[#allocation2 + $0x30] sm:$0xff] %v26
    %35 = vst [vmem:[#allocation2 + $0x38] sm:$0xff] %v26
    %36 = vst [vmem:[#allocation2 + $0x40] sm:$0xff] %v26
    %37 = vst [vmem:[#allocation2 + $0x48] sm:$0xff] %v26
    %38 = vst [vmem:[#allocation2 + $0x50] sm:$0xff] %v26
    %39 = vst [vmem:[#allocation2 + $0x58] sm:$0xff] %v26
    %40 = vst [vmem:[#allocation2 + $0x60] sm:$0xff] %v26
    %41 = vst [vmem:[#allocation2 + $0x68] sm:$0xff] %v26
    %42 = vst [vmem:[#allocation2 + $0x70] sm:$0xff] %v26
    %43 = vst [vmem:[#allocation2 + $0x78] sm:$0xff] %v26
  $region21: #{basic_gnn_forward.4} parent=0 // pred_fallthru
    _
  %s44 = smul.u32 0, 128
  %s45 = scalar_lea.vmem %s1, %s44
  %v46 = vld [vmem:[%s45] sm:$0xff]
  %v47 = vld [vmem:[%s45 + $0x8] sm:$0xff]
  %v48 = vld [vmem:[%s45 + $0x10] sm:$0xff]
  %v49 = vld [vmem:[%s45 + $0x18] sm:$0xff]
  %v50 = vld [vmem:[%s45 + $0x20] sm:$0xff]
  %v51 = vld [vmem:[%s45 + $0x28] sm:$0xff]
  %v52 = vld [vmem:[%s45 + $0x30] sm:$0xff]
  %v53 = vld [vmem:[%s45 + $0x38] sm:$0xff]
  %v54 = vld [vmem:[%s45 + $0x40] sm:$0xff]
  %v55 = vld [vmem:[%s45 + $0x48] sm:$0xff]
  %v56 = vld [vmem:[%s45 + $0x50] sm:$0xff]
  %v57 = vld [vmem:[%s45 + $0x58] sm:$0xff]
  %v58 = vld [vmem:[%s45 + $0x60] sm:$0xff]
  %v59 = vld [vmem:[%s45 + $0x68] sm:$0xff]
  %v60 = vld [vmem:[%s45 + $0x70] sm:$0xff]
  %v61 = vld [vmem:[%s45 + $0x78] sm:$0xff]
  %v62 = vld [vmem:[#allocation2] sm:$0xff]
  %v63 = vld [vmem:[#allocation2 + $0x8] sm:$0xff]
  %v64 = vld [vmem:[#allocation2 + $0x10] sm:$0xff]
  %v65 = vld [vmem:[#allocation2 + $0x18] sm:$0xff]
  %v66 = vld [vmem:[#allocation2 + $0x20] sm:$0xff]
  %v67 = vld [vmem:[#allocation2 + $0x28] sm:$0xff]
  %v68 = vld [vmem:[#allocation2 + $0x30] sm:$0xff]
  %v69 = vld [vmem:[#allocation2 + $0x38] sm:$0xff]
  %v70 = vld [vmem:[#allocation2 + $0x40] sm:$0xff]
  %v71 = vld [vmem:[#allocation2 + $0x48] sm:$0xff]
  %v72 = vld [vmem:[#allocation2 + $0x50] sm:$0xff]
  %v73 = vld [vmem:[#allocation2 + $0x58] sm:$0xff]
  %v74 = vld [vmem:[#allocation2 + $0x60] sm:$0xff]
  %v75 = vld [vmem:[#allocation2 + $0x68] sm:$0xff]
  %v76 = vld [vmem:[#allocation2 + $0x70] sm:$0xff]
  %v77 = vld [vmem:[#allocation2 + $0x78] sm:$0xff]
  %v78 = vld [vmem:[%s0] sm:$0xff]
  %v79 = vld [vmem:[%s0 + $0x8] sm:$0xff]
  %v80 = vld [vmem:[%s0 + $0x10] sm:$0xff]
  %v81 = vld [vmem:[%s0 + $0x18] sm:$0xff]
  %v82 = vld [vmem:[%s0 + $0x20] sm:$0xff]
  %v83 = vld [vmem:[%s0 + $0x28] sm:$0xff]
  %v84 = vld [vmem:[%s0 + $0x30] sm:$0xff]
  %v85 = vld [vmem:[%s0 + $0x38] sm:$0xff]
  %v86 = vld [vmem:[%s0 + $0x40] sm:$0xff]
  %v87 = vld [vmem:[%s0 + $0x48] sm:$0xff]
  %v88 = vld [vmem:[%s0 + $0x50] sm:$0xff]
  %v89 = vld [vmem:[%s0 + $0x58] sm:$0xff]
  %v90 = vld [vmem:[%s0 + $0x60] sm:$0xff]
  %v91 = vld [vmem:[%s0 + $0x68] sm:$0xff]
  %v92 = vld [vmem:[%s0 + $0x70] sm:$0xff]
  %v93 = vld [vmem:[%s0 + $0x78] sm:$0xff]
  %94 = vmatprep.subr.mxu0 0.0
  %95 = vmatpush1.msra.mxu0 %v46
  %96 = vmatprep.subr.mxu0 0.0
  %97 = vmatpush1.msra.mxu0 %v47
  %98 = vmatprep.subr.mxu0 0.0
  %99 = vmatpush1.msra.mxu0 %v48
  %100 = vmatprep.subr.mxu0 0.0
  %101 = vmatpush1.msra.mxu0 %v49
  %102 = vmatprep.subr.mxu0 0.0
  %103 = vmatpush1.msra.mxu0 %v50
  %104 = vmatprep.subr.mxu0 0.0
  %105 = vmatpush1.msra.mxu0 %v51
  %106 = vmatprep.subr.mxu0 0.0
  %107 = vmatpush1.msra.mxu0 %v52
  %108 = vmatprep.subr.mxu0 0.0
  %109 = vmatpush1.msra.mxu0 %v53
  %110 = vmatprep.subr.mxu0 0.0
  %111 = vmatpush1.msra.mxu0 %v54
  %112 = vmatprep.subr.mxu0 0.0
  %113 = vmatpush1.msra.mxu0 %v55
  %114 = vmatprep.subr.mxu0 0.0
  %115 = vmatpush1.msra.mxu0 %v56
  %116 = vmatprep.subr.mxu0 0.0
  %117 = vmatpush1.msra.mxu0 %v57
  %118 = vmatprep.subr.mxu0 0.0
  %119 = vmatpush1.msra.mxu0 %v58
  %120 = vmatprep.subr.mxu0 0.0
  %121 = vmatpush1.msra.mxu0 %v59
  %122 = vmatprep.subr.mxu0 0.0
  %123 = vmatpush1.msra.mxu0 %v60
  %124 = vmatprep.subr.mxu0 0.0
  %125 = vmatpush1.msra.mxu0 %v61
  %126 = vmatprep.subr.mxu0 0.0
  %127 = vmatpush1.msra.mxu0 0.0
  %128 = vmatprep.subr.mxu0 0.0
  %129 = vmatpush1.msra.mxu0 0.0
  %130 = vmatprep.subr.mxu0 0.0
  %131 = vmatpush1.msra.mxu0 0.0
  %132 = vmatprep.subr.mxu0 0.0
  %133 = vmatpush1.msra.mxu0 0.0
  %134 = vmatprep.subr.mxu0 0.0
  %135 = vmatpush1.msra.mxu0 0.0
  %136 = vmatprep.subr.mxu0 0.0
  %137 = vmatpush1.msra.mxu0 0.0
  %138 = vmatprep.subr.mxu0 0.0
  %139 = vmatpush1.msra.mxu0 0.0
  %140 = vmatprep.subr.mxu0 0.0
  %141 = vmatpush1.msra.mxu0 0.0
  %142 = vmatprep.subr.mxu0 0.0
  %143 = vmatpush1.msra.mxu0 0.0
  %144 = vmatprep.subr.mxu0 0.0
  %145 = vmatpush1.msra.mxu0 0.0
  %146 = vmatprep.subr.mxu0 0.0
  %147 = vmatpush1.msra.mxu0 0.0
  %148 = vmatprep.subr.mxu0 0.0
  %149 = vmatpush1.msra.mxu0 0.0
  %150 = vmatprep.subr.mxu0 0.0
  %151 = vmatpush1.msra.mxu0 0.0
  %152 = vmatprep.subr.mxu0 0.0
  %153 = vmatpush1.msra.mxu0 0.0
  %154 = vmatprep.subr.mxu0 0.0
  %155 = vmatpush1.msra.mxu0 0.0
  %156 = vmatprep.subr.mxu0 0.0
  %157 = vmatpush1.msra.mxu0 0.0
  %158 = vmatprep.mubr.f32.mxu0 0.0
  %159 = vmatmul.mubr.f32.gmra.mrb[0].mxu0 %v78
  %v160 = vpop.f32.mrb[0].mxu0
  %v161 = vadd.f32 0.0, %v160
  %v162 = vpop.f32.mrb[0].mxu0
  %163 = vmatprep.mubr.f32.mxu0 0.0
  %164 = vmatmul.mubr.f32.gmra.mrb[0].mxu0 %v79
  %v165 = vpop.f32.mrb[0].mxu0
  %v166 = vadd.f32 0.0, %v165
  %v167 = vpop.f32.mrb[0].mxu0
  %168 = vmatprep.mubr.f32.mxu0 0.0
  %169 = vmatmul.mubr.f32.gmra.mrb[0].mxu0 %v80
  %v170 = vpop.f32.mrb[0].mxu0
  %v171 = vadd.f32 0.0, %v170
  %v172 = vpop.f32.mrb[0].mxu0
  %173 = vmatprep.mubr.f32.mxu0 0.0
  %174 = vmatmul.mubr.f32.gmra.mrb[0].mxu0 %v81
  %v175 = vpop.f32.mrb[0].mxu0
  %v176 = vadd.f32 0.0, %v175
  %v177 = vpop.f32.mrb[0].mxu0
  %178 = vmatprep.mubr.f32.mxu0 0.0
  %179 = vmatmul.mubr.f32.gmra.mrb[0].mxu0 %v82
  %v180 = vpop.f32.mrb[0].mxu0
  %v181 = vadd.f32 0.0, %v180
  %v182 = vpop.f32.mrb[0].mxu0
  %183 = vmatprep.mubr.f32.mxu0 0.0
  %184 = vmatmul.mubr.f32.gmra.mrb[0].mxu0 %v83
  %v185 = vpop.f32.mrb[0].mxu0
  %v186 = vadd.f32 0.0, %v185
  %v187 = vpop.f32.mrb[0].mxu0
  %188 = vmatprep.mubr.f32.mxu0 0.0
  %189 = vmatmul.mubr.f32.gmra.mrb[0].mxu0 %v84
  %v190 = vpop.f32.mrb[0].mxu0
  %v191 = vadd.f32 0.0, %v190
  %v192 = vpop.f32.mrb[0].mxu0
  %193 = vmatprep.mubr.f32.mxu0 0.0
  %194 = vmatmul.mubr.f32.gmra.mrb[0].mxu0 %v85
  %v195 = vpop.f32.mrb[0].mxu0
  %v196 = vadd.f32 0.0, %v195
  %v197 = vpop.f32.mrb[0].mxu0
  %198 = vmatprep.mubr.f32.mxu0 0.0
  %199 = vmatmul.mubr.f32.gmra.mrb[0].mxu0 %v86
  %v200 = vpop.f32.mrb[0].mxu0
  %v201 = vadd.f32 0.0, %v200
  %v202 = vpop.f32.mrb[0].mxu0
  %203 = vmatprep.mubr.f32.mxu0 0.0
  %204 = vmatmul.mubr.f32.gmra.mrb[0].mxu0 %v87
  %v205 = vpop.f32.mrb[0].mxu0
  %v206 = vadd.f32 0.0, %v205
  %v207 = vpop.f32.mrb[0].mxu0
  %208 = vmatprep.mubr.f32.mxu0 0.0
  %209 = vmatmul.mubr.f32.gmra.mrb[0].mxu0 %v88
  %v210 = vpop.f32.mrb[0].mxu0
  %v211 = vadd.f32 0.0, %v210
  %v212 = vpop.f32.mrb[0].mxu0
  %213 = vmatprep.mubr.f32.mxu0 0.0
  %214 = vmatmul.mubr.f32.gmra.mrb[0].mxu0 %v89
  %v215 = vpop.f32.mrb[0].mxu0
  %v216 = vadd.f32 0.0, %v215
  %v217 = vpop.f32.mrb[0].mxu0
  %218 = vmatprep.mubr.f32.mxu0 0.0
  %219 = vmatmul.mubr.f32.gmra.mrb[0].mxu0 %v90
  %v220 = vpop.f32.mrb[0].mxu0
  %v221 = vadd.f32 0.0, %v220
  %v222 = vpop.f32.mrb[0].mxu0
  %223 = vmatprep.mubr.f32.mxu0 0.0
  %224 = vmatmul.mubr.f32.gmra.mrb[0].mxu0 %v91
  %v225 = vpop.f32.mrb[0].mxu0
  %v226 = vadd.f32 0.0, %v225
  %v227 = vpop.f32.mrb[0].mxu0
  %228 = vmatprep.mubr.f32.mxu0 0.0
  %229 = vmatmul.mubr.f32.gmra.mrb[0].mxu0 %v92
  %v230 = vpop.f32.mrb[0].mxu0
  %v231 = vadd.f32 0.0, %v230
  %v232 = vpop.f32.mrb[0].mxu0
  %233 = vmatprep.mubr.f32.mxu0 0.0
  %234 = vmatmul.mubr.f32.gmra.mrb[0].mxu0 %v93
  %v235 = vpop.f32.mrb[0].mxu0
  %v236 = vadd.f32 0.0, %v235
  %v237 = vpop.f32.mrb[0].mxu0
  %238 = vdwg.mxu0
  %v239 = vadd.f32 %v62, %v161
  %v240 = vadd.f32 %v63, %v166
  %v241 = vadd.f32 %v64, %v171
  %v242 = vadd.f32 %v65, %v176
  %v243 = vadd.f32 %v66, %v181
  %v244 = vadd.f32 %v67, %v186
  %v245 = vadd.f32 %v68, %v191
  %v246 = vadd.f32 %v69, %v196
  %v247 = vadd.f32 %v70, %v201
  %v248 = vadd.f32 %v71, %v206
  %v249 = vadd.f32 %v72, %v211
  %v250 = vadd.f32 %v73, %v216
  %v251 = vadd.f32 %v74, %v221
  %v252 = vadd.f32 %v75, %v226
  %v253 = vadd.f32 %v76, %v231
  %v254 = vadd.f32 %v77, %v236
  %255 = vst [vmem:[#allocation2] sm:$0xff] %v239
  %256 = vst [vmem:[#allocation2 + $0x8] sm:$0xff] %v240
  %257 = vst [vmem:[#allocation2 + $0x10] sm:$0xff] %v241
  %258 = vst [vmem:[#allocation2 + $0x18] sm:$0xff] %v242
  %259 = vst [vmem:[#allocation2 + $0x20] sm:$0xff] %v243
  %260 = vst [vmem:[#allocation2 + $0x28] sm:$0xff] %v244
  %261 = vst [vmem:[#allocation2 + $0x30] sm:$0xff] %v245
  %262 = vst [vmem:[#allocation2 + $0x38] sm:$0xff] %v246
  %263 = vst [vmem:[#allocation2 + $0x40] sm:$0xff] %v247
  %264 = vst [vmem:[#allocation2 + $0x48] sm:$0xff] %v248
  %265 = vst [vmem:[#allocation2 + $0x50] sm:$0xff] %v249
  %266 = vst [vmem:[#allocation2 + $0x58] sm:$0xff] %v250
  %267 = vst [vmem:[#allocation2 + $0x60] sm:$0xff] %v251
  %268 = vst [vmem:[#allocation2 + $0x68] sm:$0xff] %v252
  %269 = vst [vmem:[#allocation2 + $0x70] sm:$0xff] %v253
  %270 = vst [vmem:[#allocation2 + $0x78] sm:$0xff] %v254
  // Predicated region
  $region22: #{basic_gnn_forward.4} parent=0 // pred_check
    %p271 = pneg %p17
  $region23: #{basic_gnn_forward.4} parent=0 // pred_check_branch
    %273 = sbr.rel (%p271) target = $region25
  $region24: #{basic_gnn_forward.4} parent=0 // pred_region
    %v274 = vld [vmem:[#allocation2] sm:$0xff]
    %v275 = vld [vmem:[#allocation2 + $0x8] sm:$0xff]
    %v276 = vld [vmem:[#allocation2 + $0x10] sm:$0xff]
    %v277 = vld [vmem:[#allocation2 + $0x18] sm:$0xff]
    %v278 = vld [vmem:[#allocation2 + $0x20] sm:$0xff]
    %v279 = vld [vmem:[#allocation2 + $0x28] sm:$0xff]
    %v280 = vld [vmem:[#allocation2 + $0x30] sm:$0xff]
    %v281 = vld [vmem:[#allocation2 + $0x38] sm:$0xff]
    %v282 = vld [vmem:[#allocation2 + $0x40] sm:$0xff]
    %v283 = vld [vmem:[#allocation2 + $0x48] sm:$0xff]
    %v284 = vld [vmem:[#allocation2 + $0x50] sm:$0xff]
    %v285 = vld [vmem:[#allocation2 + $0x58] sm:$0xff]
    %v286 = vld [vmem:[#allocation2 + $0x60] sm:$0xff]
    %v287 = vld [vmem:[#allocation2 + $0x68] sm:$0xff]
    %v288 = vld [vmem:[#allocation2 + $0x70] sm:$0xff]
    %v289 = vld [vmem:[#allocation2 + $0x78] sm:$0xff]
    %v290 = vmax.f32 %v274, 0.0
    %v291 = vmax.f32 %v275, 0.0
    %v292 = vmax.f32 %v276, 0.0
    %v293 = vmax.f32 %v277, 0.0
    %v294 = vmax.f32 %v278, 0.0
    %v295 = vmax.f32 %v279, 0.0
    %v296 = vmax.f32 %v280, 0.0
    %v297 = vmax.f32 %v281, 0.0
    %v298 = vmax.f32 %v282, 0.0
    %v299 = vmax.f32 %v283, 0.0
    %v300 = vmax.f32 %v284, 0.0
    %v301 = vmax.f32 %v285, 0.0
    %v302 = vmax.f32 %v286, 0.0
    %v303 = vmax.f32 %v287, 0.0
    %v304 = vmax.f32 %v288, 0.0
    %v305 = vmax.f32 %v289, 0.0
    %v306 = vld [vmem:[%s3] sm:$0xff]
    %v307 = vld [vmem:[%s3 + $0x8] sm:$0xff]
    %v308 = vld [vmem:[%s3 + $0x10] sm:$0xff]
    %v309 = vld [vmem:[%s3 + $0x18] sm:$0xff]
    %v310 = vld [vmem:[%s3 + $0x20] sm:$0xff]
    %v311 = vld [vmem:[%s3 + $0x28] sm:$0xff]
    %v312 = vld [vmem:[%s3 + $0x30] sm:$0xff]
    %v313 = vld [vmem:[%s3 + $0x38] sm:$0xff]
    %v314 = vld [vmem:[%s3 + $0x40] sm:$0xff]
    %v315 = vld [vmem:[%s3 + $0x48] sm:$0xff]
    %v316 = vld [vmem:[%s3 + $0x50] sm:$0xff]
    %v317 = vld [vmem:[%s3 + $0x58] sm:$0xff]
    %v318 = vld [vmem:[%s3 + $0x60] sm:$0xff]
    %v319 = vld [vmem:[%s3 + $0x68] sm:$0xff]
    %v320 = vld [vmem:[%s3 + $0x70] sm:$0xff]
    %v321 = vld [vmem:[%s3 + $0x78] sm:$0xff]
    %322 = vmatprep.subr.mxu0 0.0
    %323 = vmatpush1.msra.mxu0 %v306
    %324 = vmatprep.subr.mxu0 0.0
    %325 = vmatpush1.msra.mxu0 %v307
    %326 = vmatprep.subr.mxu0 0.0
    %327 = vmatpush1.msra.mxu0 %v308
    %328 = vmatprep.subr.mxu0 0.0
    %329 = vmatpush1.msra.mxu0 %v309
    %330 = vmatprep.subr.mxu0 0.0
    %331 = vmatpush1.msra.mxu0 %v310
    %332 = vmatprep.subr.mxu0 0.0
    %333 = vmatpush1.msra.mxu0 %v311
    %334 = vmatprep.subr.mxu0 0.0
    %335 = vmatpush1.msra.mxu0 %v312
    %336 = vmatprep.subr.mxu0 0.0
    %337 = vmatpush1.msra.mxu0 %v313
    %338 = vmatprep.subr.mxu0 0.0
    %339 = vmatpush1.msra.mxu0 %v314
    %340 = vmatprep.subr.mxu0 0.0
    %341 = vmatpush1.msra.mxu0 %v315
    %342 = vmatprep.subr.mxu0 0.0
    %343 = vmatpush1.msra.mxu0 %v316
    %344 = vmatprep.subr.mxu0 0.0
    %345 = vmatpush1.msra.mxu0 %v317
    %346 = vmatprep.subr.mxu0 0.0
    %347 = vmatpush1.msra.mxu0 %v318
    %348 = vmatprep.subr.mxu0 0.0
    %349 = vmatpush1.msra.mxu0 %v319
    %350 = vmatprep.subr.mxu0 0.0
    %351 = vmatpush1.msra.mxu0 %v320
    %352 = vmatprep.subr.mxu0 0.0
    %353 = vmatpush1.msra.mxu0 %v321
    %354 = vmatprep.subr.mxu0 0.0
    %355 = vmatpush1.msra.mxu0 0.0
    %356 = vmatprep.subr.mxu0 0.0
    %357 = vmatpush1.msra.mxu0 0.0
    %358 = vmatprep.subr.mxu0 0.0
    %359 = vmatpush1.msra.mxu0 0.0
    %360 = vmatprep.subr.mxu0 0.0
    %361 = vmatpush1.msra.mxu0 0.0
    %362 = vmatprep.subr.mxu0 0.0
    %363 = vmatpush1.msra.mxu0 0.0
    %364 = vmatprep.subr.mxu0 0.0
    %365 = vmatpush1.msra.mxu0 0.0
    %366 = vmatprep.subr.mxu0 0.0
    %367 = vmatpush1.msra.mxu0 0.0
    %368 = vmatprep.subr.mxu0 0.0
    %369 = vmatpush1.msra.mxu0 0.0
    %370 = vmatprep.subr.mxu0 0.0
    %371 = vmatpush1.msra.mxu0 0.0
    %372 = vmatprep.subr.mxu0 0.0
    %373 = vmatpush1.msra.mxu0 0.0
    %374 = vmatprep.subr.mxu0 0.0
    %375 = vmatpush1.msra.mxu0 0.0
    %376 = vmatprep.subr.mxu0 0.0
    %377 = vmatpush1.msra.mxu0 0.0
    %378 = vmatprep.subr.mxu0 0.0
    %379 = vmatpush1.msra.mxu0 0.0
    %380 = vmatprep.subr.mxu0 0.0
    %381 = vmatpush1.msra.mxu0 0.0
    %382 = vmatprep.subr.mxu0 0.0
    %383 = vmatpush1.msra.mxu0 0.0
    %384 = vmatprep.subr.mxu0 0.0
    %385 = vmatpush1.msra.mxu0 0.0
    %386 = vmatprep.mubr.f32.mxu0 0.0
    %387 = vmatmul.mubr.f32.gmra.mrb[0].mxu0 %v290
    %v388 = vpop.f32.mrb[0].mxu0
    %v389 = vadd.f32 0.0, %v388
    %v390 = vpop.f32.mrb[0].mxu0
    %391 = vmatprep.mubr.f32.mxu0 0.0
    %392 = vmatmul.mubr.f32.gmra.mrb[0].mxu0 %v291
    %v393 = vpop.f32.mrb[0].mxu0
    %v394 = vadd.f32 0.0, %v393
    %v395 = vpop.f32.mrb[0].mxu0
    %396 = vmatprep.mubr.f32.mxu0 0.0
    %397 = vmatmul.mubr.f32.gmra.mrb[0].mxu0 %v292
    %v398 = vpop.f32.mrb[0].mxu0
    %v399 = vadd.f32 0.0, %v398
    %v400 = vpop.f32.mrb[0].mxu0
    %401 = vmatprep.mubr.f32.mxu0 0.0
    %402 = vmatmul.mubr.f32.gmra.mrb[0].mxu0 %v293
    %v403 = vpop.f32.mrb[0].mxu0
    %v404 = vadd.f32 0.0, %v403
    %v405 = vpop.f32.mrb[0].mxu0
    %406 = vmatprep.mubr.f32.mxu0 0.0
    %407 = vmatmul.mubr.f32.gmra.mrb[0].mxu0 %v294
    %v408 = vpop.f32.mrb[0].mxu0
    %v409 = vadd.f32 0.0, %v408
    %v410 = vpop.f32.mrb[0].mxu0
    %411 = vmatprep.mubr.f32.mxu0 0.0
    %412 = vmatmul.mubr.f32.gmra.mrb[0].mxu0 %v295
    %v413 = vpop.f32.mrb[0].mxu0
    %v414 = vadd.f32 0.0, %v413
    %v415 = vpop.f32.mrb[0].mxu0
    %416 = vmatprep.mubr.f32.mxu0 0.0
    %417 = vmatmul.mubr.f32.gmra.mrb[0].mxu0 %v296
    %v418 = vpop.f32.mrb[0].mxu0
    %v419 = vadd.f32 0.0, %v418
    %v420 = vpop.f32.mrb[0].mxu0
    %421 = vmatprep.mubr.f32.mxu0 0.0
    %422 = vmatmul.mubr.f32.gmra.mrb[0].mxu0 %v297
    %v423 = vpop.f32.mrb[0].mxu0
    %v424 = vadd.f32 0.0, %v423
    %v425 = vpop.f32.mrb[0].mxu0
    %426 = vmatprep.mubr.f32.mxu0 0.0
    %427 = vmatmul.mubr.f32.gmra.mrb[0].mxu0 %v298
    %v428 = vpop.f32.mrb[0].mxu0
    %v429 = vadd.f32 0.0, %v428
    %v430 = vpop.f32.mrb[0].mxu0
    %431 = vmatprep.mubr.f32.mxu0 0.0
    %432 = vmatmul.mubr.f32.gmra.mrb[0].mxu0 %v299
    %v433 = vpop.f32.mrb[0].mxu0
    %v434 = vadd.f32 0.0, %v433
    %v435 = vpop.f32.mrb[0].mxu0
    %436 = vmatprep.mubr.f32.mxu0 0.0
    %437 = vmatmul.mubr.f32.gmra.mrb[0].mxu0 %v300
    %v438 = vpop.f32.mrb[0].mxu0
    %v439 = vadd.f32 0.0, %v438
    %v440 = vpop.f32.mrb[0].mxu0
    %441 = vmatprep.mubr.f32.mxu0 0.0
    %442 = vmatmul.mubr.f32.gmra.mrb[0].mxu0 %v301
    %v443 = vpop.f32.mrb[0].mxu0
    %v444 = vadd.f32 0.0, %v443
    %v445 = vpop.f32.mrb[0].mxu0
    %446 = vmatprep.mubr.f32.mxu0 0.0
    %447 = vmatmul.mubr.f32.gmra.mrb[0].mxu0 %v302
    %v448 = vpop.f32.mrb[0].mxu0
    %v449 = vadd.f32 0.0, %v448
    %v450 = vpop.f32.mrb[0].mxu0
    %451 = vmatprep.mubr.f32.mxu0 0.0
    %452 = vmatmul.mubr.f32.gmra.mrb[0].mxu0 %v303
    %v453 = vpop.f32.mrb[0].mxu0
    %v454 = vadd.f32 0.0, %v453
    %v455 = vpop.f32.mrb[0].mxu0
    %456 = vmatprep.mubr.f32.mxu0 0.0
    %457 = vmatmul.mubr.f32.gmra.mrb[0].mxu0 %v304
    %v458 = vpop.f32.mrb[0].mxu0
    %v459 = vadd.f32 0.0, %v458
    %v460 = vpop.f32.mrb[0].mxu0
    %461 = vmatprep.mubr.f32.mxu0 0.0
    %462 = vmatmul.mubr.f32.gmra.mrb[0].mxu0 %v305
    %v463 = vpop.f32.mrb[0].mxu0
    %v464 = vadd.f32 0.0, %v463
    %v465 = vpop.f32.mrb[0].mxu0
    %466 = vdwg.mxu0
    %467 = vst [vmem:[%s4] sm:$0xff] %v389
    %468 = vst [vmem:[%s4 + $0x8] sm:$0xff] %v394
    %469 = vst [vmem:[%s4 + $0x10] sm:$0xff] %v399
    %470 = vst [vmem:[%s4 + $0x18] sm:$0xff] %v404
    %471 = vst [vmem:[%s4 + $0x20] sm:$0xff] %v409
    %472 = vst [vmem:[%s4 + $0x28] sm:$0xff] %v414
    %473 = vst [vmem:[%s4 + $0x30] sm:$0xff] %v419
    %474 = vst [vmem:[%s4 + $0x38] sm:$0xff] %v424
    %475 = vst [vmem:[%s4 + $0x40] sm:$0xff] %v429
    %476 = vst [vmem:[%s4 + $0x48] sm:$0xff] %v434
    %477 = vst [vmem:[%s4 + $0x50] sm:$0xff] %v439
    %478 = vst [vmem:[%s4 + $0x58] sm:$0xff] %v444
    %479 = vst [vmem:[%s4 + $0x60] sm:$0xff] %v449
    %480 = vst [vmem:[%s4 + $0x68] sm:$0xff] %v454
    %481 = vst [vmem:[%s4 + $0x70] sm:$0xff] %v459
    %482 = vst [vmem:[%s4 + $0x78] sm:$0xff] %v464
  $region25: #{basic_gnn_forward.4} parent=0 // pred_fallthru
    _
  // Predicated region
  $region26: #{basic_gnn_forward.4} parent=0 // pred_check
    _
  $region27: #{basic_gnn_forward.4} parent=0 // pred_check_branch
    %484 = sbr.rel (0) target = $region29
  $region28: #{basic_gnn_forward.4} parent=0 // pred_region
    _
  $region29: #{basic_gnn_forward.4} parent=0 // pred_fallthru
    _
  // Predicated region
  $region30: #{basic_gnn_forward.4} parent=0 // pred_check
    _
  $region31: #{basic_gnn_forward.4} parent=0 // pred_check_branch
    %486 = sbr.rel (0) target = $region33
  $region32: #{basic_gnn_forward.4} parent=0 // pred_region
    _
  $region33: #{basic_gnn_forward.4} parent=0 // pred_fallthru
    _

// kernel: basic_gnn_forward.5
$region0: #{basic_gnn_forward.5}
  #allocation0 [shape = 'u32[]', space=smem, size = 0x4, offset = 0x4, fixed_abs, tag = 'smem constant byte address 0x4 - core index']
  #allocation1 [shape = 'u32[144,128]{1,0:T(1,128)}', space=vmem, size = 0x12000, scoped, tag = 'internal scratch']
  #allocation2 [shape = 'f32[128,128]{1,0:T(8,128)}', space=vmem, size = 0x10000, scoped, tag = 'scratch operand']
  %s0 = inlined_call_operand.vmem [shape: f32[128,128], index: 0, kind: input, shape index: {}]
  %s1 = inlined_call_operand.vmem [shape: f32[128,128], index: 1, kind: input, shape index: {}]
  %s2 = inlined_call_operand.vmem [shape: f32[1,128], index: 2, kind: input, shape index: {}]
  %s3 = inlined_call_operand.vmem [shape: f32[128,128], index: 3, kind: input, shape index: {}]
  %s4 = inlined_call_operand.vmem [shape: f32[1,128], index: 4, kind: input, shape index: {}]
  %s5 = inlined_call_operand.vmem [shape: f32[128,128], index: 5, kind: output, shape index: {}]
  %s6 = sld [smem:[#allocation0]]
  $region38: #{basic_gnn_forward.5} parent=0
    _
  %s8 = ssub.s32 1, %s6
  %s9 = scalar_select 0, %s8, %s6
  // Predicated region
  $region2: #{basic_gnn_forward.5} parent=0 // pred_check
    _
  $region3: #{basic_gnn_forward.5} parent=0 // pred_check_branch
    %11 = sbr.rel (0) target = $region5
  $region4: #{basic_gnn_forward.5} parent=0 // pred_region
    _
  $region5: #{basic_gnn_forward.5} parent=0 // pred_fallthru
    _
  // Predicated region
  $region6: #{basic_gnn_forward.5} parent=0 // pred_check
    _
  $region7: #{basic_gnn_forward.5} parent=0 // pred_check_branch
    %13 = sbr.rel (0) target = $region9
  $region8: #{basic_gnn_forward.5} parent=0 // pred_region
    _
  $region9: #{basic_gnn_forward.5} parent=0 // pred_fallthru
    _
  // Predicated region
  $region10: #{basic_gnn_forward.5} parent=0 // pred_check
    _
  $region11: #{basic_gnn_forward.5} parent=0 // pred_check_branch
    %15 = sbr.rel (0) target = $region13
  $region12: #{basic_gnn_forward.5} parent=0 // pred_region
    _
  $region13: #{basic_gnn_forward.5} parent=0 // pred_fallthru
    _
  // Predicated region
  $region14: #{basic_gnn_forward.5} parent=0 // pred_check
    _
  $region15: #{basic_gnn_forward.5} parent=0 // pred_check_branch
    %17 = sbr.rel (0) target = $region17
  $region16: #{basic_gnn_forward.5} parent=0 // pred_region
    _
  $region17: #{basic_gnn_forward.5} parent=0 // pred_fallthru
    _
  // Predicated region
  $region18: #{basic_gnn_forward.5} parent=0 // pred_check
    _
  $region19: #{basic_gnn_forward.5} parent=0 // pred_check_branch
    %19 = sbr.rel (0) target = $region21
  $region20: #{basic_gnn_forward.5} parent=0 // pred_region
    _
  $region21: #{basic_gnn_forward.5} parent=0 // pred_fallthru
    _
  %p20 = scmp.eq.s32.totalorder 0, 0
  // Predicated region
  $region22: #{basic_gnn_forward.5} parent=0 // pred_check
    %p21 = pneg %p20
  $region23: #{basic_gnn_forward.5} parent=0 // pred_check_branch
    %23 = sbr.rel (%p21) target = $region25
  $region24: #{basic_gnn_forward.5} parent=0 // pred_region
    %v24 = vld [vmem:[%s2] sm:$0x1]
    %v26 = vlaneseq
    %v27 = vshrl.u32 %v26, 7
    %v28 = vsub.s32 0, %v27
    %v29 = vrot.slane %v24, %v28
    %31 = vst [vmem:[#allocation2] sm:$0xff] %v29
    %32 = vst [vmem:[#allocation2 + $0x8] sm:$0xff] %v29
    %33 = vst [vmem:[#allocation2 + $0x10] sm:$0xff] %v29
    %34 = vst [vmem:[#allocation2 + $0x18] sm:$0xff] %v29
    %35 = vst [vmem:[#allocation2 + $0x20] sm:$0xff] %v29
    %36 = vst [vmem:[#allocation2 + $0x28] sm:$0xff] %v29
    %37 = vst [vmem:[#allocation2 + $0x30] sm:$0xff] %v29
    %38 = vst [vmem:[#allocation2 + $0x38] sm:$0xff] %v29
    %39 = vst [vmem:[#allocation2 + $0x40] sm:$0xff] %v29
    %40 = vst [vmem:[#allocation2 + $0x48] sm:$0xff] %v29
    %41 = vst [vmem:[#allocation2 + $0x50] sm:$0xff] %v29
    %42 = vst [vmem:[#allocation2 + $0x58] sm:$0xff] %v29
    %43 = vst [vmem:[#allocation2 + $0x60] sm:$0xff] %v29
    %44 = vst [vmem:[#allocation2 + $0x68] sm:$0xff] %v29
    %45 = vst [vmem:[#allocation2 + $0x70] sm:$0xff] %v29
    %46 = vst [vmem:[#allocation2 + $0x78] sm:$0xff] %v29
  $region25: #{basic_gnn_forward.5} parent=0 // pred_fallthru
    _
  %s47 = smul.u32 0, 128
  %s48 = scalar_lea.vmem %s1, %s47
  %v49 = vld [vmem:[%s48] sm:$0xff]
  %v50 = vld [vmem:[%s48 + $0x8] sm:$0xff]
  %v51 = vld [vmem:[%s48 + $0x10] sm:$0xff]
  %v52 = vld [vmem:[%s48 + $0x18] sm:$0xff]
  %v53 = vld [vmem:[%s48 + $0x20] sm:$0xff]
  %v54 = vld [vmem:[%s48 + $0x28] sm:$0xff]
  %v55 = vld [vmem:[%s48 + $0x30] sm:$0xff]
  %v56 = vld [vmem:[%s48 + $0x38] sm:$0xff]
  %v57 = vld [vmem:[%s48 + $0x40] sm:$0xff]
  %v58 = vld [vmem:[%s48 + $0x48] sm:$0xff]
  %v59 = vld [vmem:[%s48 + $0x50] sm:$0xff]
  %v60 = vld [vmem:[%s48 + $0x58] sm:$0xff]
  %v61 = vld [vmem:[%s48 + $0x60] sm:$0xff]
  %v62 = vld [vmem:[%s48 + $0x68] sm:$0xff]
  %v63 = vld [vmem:[%s48 + $0x70] sm:$0xff]
  %v64 = vld [vmem:[%s48 + $0x78] sm:$0xff]
  %v65 = vld [vmem:[#allocation2] sm:$0xff]
  %v66 = vld [vmem:[#allocation2 + $0x8] sm:$0xff]
  %v67 = vld [vmem:[#allocation2 + $0x10] sm:$0xff]
  %v68 = vld [vmem:[#allocation2 + $0x18] sm:$0xff]
  %v69 = vld [vmem:[#allocation2 + $0x20] sm:$0xff]
  %v70 = vld [vmem:[#allocation2 + $0x28] sm:$0xff]
  %v71 = vld [vmem:[#allocation2 + $0x30] sm:$0xff]
  %v72 = vld [vmem:[#allocation2 + $0x38] sm:$0xff]
  %v73 = vld [vmem:[#allocation2 + $0x40] sm:$0xff]
  %v74 = vld [vmem:[#allocation2 + $0x48] sm:$0xff]
  %v75 = vld [vmem:[#allocation2 + $0x50] sm:$0xff]
  %v76 = vld [vmem:[#allocation2 + $0x58] sm:$0xff]
  %v77 = vld [vmem:[#allocation2 + $0x60] sm:$0xff]
  %v78 = vld [vmem:[#allocation2 + $0x68] sm:$0xff]
  %v79 = vld [vmem:[#allocation2 + $0x70] sm:$0xff]
  %v80 = vld [vmem:[#allocation2 + $0x78] sm:$0xff]
  %v81 = vld [vmem:[%s0] sm:$0xff]
  %v82 = vld [vmem:[%s0 + $0x8] sm:$0xff]
  %v83 = vld [vmem:[%s0 + $0x10] sm:$0xff]
  %v84 = vld [vmem:[%s0 + $0x18] sm:$0xff]
  %v85 = vld [vmem:[%s0 + $0x20] sm:$0xff]
  %v86 = vld [vmem:[%s0 + $0x28] sm:$0xff]
  %v87 = vld [vmem:[%s0 + $0x30] sm:$0xff]
  %v88 = vld [vmem:[%s0 + $0x38] sm:$0xff]
  %v89 = vld [vmem:[%s0 + $0x40] sm:$0xff]
  %v90 = vld [vmem:[%s0 + $0x48] sm:$0xff]
  %v91 = vld [vmem:[%s0 + $0x50] sm:$0xff]
  %v92 = vld [vmem:[%s0 + $0x58] sm:$0xff]
  %v93 = vld [vmem:[%s0 + $0x60] sm:$0xff]
  %v94 = vld [vmem:[%s0 + $0x68] sm:$0xff]
  %v95 = vld [vmem:[%s0 + $0x70] sm:$0xff]
  %v96 = vld [vmem:[%s0 + $0x78] sm:$0xff]
  %97 = vmatprep.subr.mxu0 0.0
  %98 = vmatpush1.msra.mxu0 %v49
  %99 = vmatprep.subr.mxu0 0.0
  %100 = vmatpush1.msra.mxu0 %v50
  %101 = vmatprep.subr.mxu0 0.0
  %102 = vmatpush1.msra.mxu0 %v51
  %103 = vmatprep.subr.mxu0 0.0
  %104 = vmatpush1.msra.mxu0 %v52
  %105 = vmatprep.subr.mxu0 0.0
  %106 = vmatpush1.msra.mxu0 %v53
  %107 = vmatprep.subr.mxu0 0.0
  %108 = vmatpush1.msra.mxu0 %v54
  %109 = vmatprep.subr.mxu0 0.0
  %110 = vmatpush1.msra.mxu0 %v55
  %111 = vmatprep.subr.mxu0 0.0
  %112 = vmatpush1.msra.mxu0 %v56
  %113 = vmatprep.subr.mxu0 0.0
  %114 = vmatpush1.msra.mxu0 %v57
  %115 = vmatprep.subr.mxu0 0.0
  %116 = vmatpush1.msra.mxu0 %v58
  %117 = vmatprep.subr.mxu0 0.0
  %118 = vmatpush1.msra.mxu0 %v59
  %119 = vmatprep.subr.mxu0 0.0
  %120 = vmatpush1.msra.mxu0 %v60
  %121 = vmatprep.subr.mxu0 0.0
  %122 = vmatpush1.msra.mxu0 %v61
  %123 = vmatprep.subr.mxu0 0.0
  %124 = vmatpush1.msra.mxu0 %v62
  %125 = vmatprep.subr.mxu0 0.0
  %126 = vmatpush1.msra.mxu0 %v63
  %127 = vmatprep.subr.mxu0 0.0
  %128 = vmatpush1.msra.mxu0 %v64
  %129 = vmatprep.subr.mxu0 0.0
  %130 = vmatpush1.msra.mxu0 0.0
  %131 = vmatprep.subr.mxu0 0.0
  %132 = vmatpush1.msra.mxu0 0.0
  %133 = vmatprep.subr.mxu0 0.0
  %134 = vmatpush1.msra.mxu0 0.0
  %135 = vmatprep.subr.mxu0 0.0
  %136 = vmatpush1.msra.mxu0 0.0
  %137 = vmatprep.subr.mxu0 0.0
  %138 = vmatpush1.msra.mxu0 0.0
  %139 = vmatprep.subr.mxu0 0.0
  %140 = vmatpush1.msra.mxu0 0.0
  %141 = vmatprep.subr.mxu0 0.0
  %142 = vmatpush1.msra.mxu0 0.0
  %143 = vmatprep.subr.mxu0 0.0
  %144 = vmatpush1.msra.mxu0 0.0
  %145 = vmatprep.subr.mxu0 0.0
  %146 = vmatpush1.msra.mxu0 0.0
  %147 = vmatprep.subr.mxu0 0.0
  %148 = vmatpush1.msra.mxu0 0.0
  %149 = vmatprep.subr.mxu0 0.0
  %150 = vmatpush1.msra.mxu0 0.0
  %151 = vmatprep.subr.mxu0 0.0
  %152 = vmatpush1.msra.mxu0 0.0
  %153 = vmatprep.subr.mxu0 0.0
  %154 = vmatpush1.msra.mxu0 0.0
  %155 = vmatprep.subr.mxu0 0.0
  %156 = vmatpush1.msra.mxu0 0.0
  %157 = vmatprep.subr.mxu0 0.0
  %158 = vmatpush1.msra.mxu0 0.0
  %159 = vmatprep.subr.mxu0 0.0
  %160 = vmatpush1.msra.mxu0 0.0
  %161 = vmatprep.mubr.f32.mxu0 0.0
  %162 = vmatmul.mubr.f32.gmra.mrb[0].mxu0 %v81
  %v163 = vpop.f32.mrb[0].mxu0
  %v164 = vadd.f32 0.0, %v163
  %v165 = vpop.f32.mrb[0].mxu0
  %166 = vmatprep.mubr.f32.mxu0 0.0
  %167 = vmatmul.mubr.f32.gmra.mrb[0].mxu0 %v82
  %v168 = vpop.f32.mrb[0].mxu0
  %v169 = vadd.f32 0.0, %v168
  %v170 = vpop.f32.mrb[0].mxu0
  %171 = vmatprep.mubr.f32.mxu0 0.0
  %172 = vmatmul.mubr.f32.gmra.mrb[0].mxu0 %v83
  %v173 = vpop.f32.mrb[0].mxu0
  %v174 = vadd.f32 0.0, %v173
  %v175 = vpop.f32.mrb[0].mxu0
  %176 = vmatprep.mubr.f32.mxu0 0.0
  %177 = vmatmul.mubr.f32.gmra.mrb[0].mxu0 %v84
  %v178 = vpop.f32.mrb[0].mxu0
  %v179 = vadd.f32 0.0, %v178
  %v180 = vpop.f32.mrb[0].mxu0
  %181 = vmatprep.mubr.f32.mxu0 0.0
  %182 = vmatmul.mubr.f32.gmra.mrb[0].mxu0 %v85
  %v183 = vpop.f32.mrb[0].mxu0
  %v184 = vadd.f32 0.0, %v183
  %v185 = vpop.f32.mrb[0].mxu0
  %186 = vmatprep.mubr.f32.mxu0 0.0
  %187 = vmatmul.mubr.f32.gmra.mrb[0].mxu0 %v86
  %v188 = vpop.f32.mrb[0].mxu0
  %v189 = vadd.f32 0.0, %v188
  %v190 = vpop.f32.mrb[0].mxu0
  %191 = vmatprep.mubr.f32.mxu0 0.0
  %192 = vmatmul.mubr.f32.gmra.mrb[0].mxu0 %v87
  %v193 = vpop.f32.mrb[0].mxu0
  %v194 = vadd.f32 0.0, %v193
  %v195 = vpop.f32.mrb[0].mxu0
  %196 = vmatprep.mubr.f32.mxu0 0.0
  %197 = vmatmul.mubr.f32.gmra.mrb[0].mxu0 %v88
  %v198 = vpop.f32.mrb[0].mxu0
  %v199 = vadd.f32 0.0, %v198
  %v200 = vpop.f32.mrb[0].mxu0
  %201 = vmatprep.mubr.f32.mxu0 0.0
  %202 = vmatmul.mubr.f32.gmra.mrb[0].mxu0 %v89
  %v203 = vpop.f32.mrb[0].mxu0
  %v204 = vadd.f32 0.0, %v203
  %v205 = vpop.f32.mrb[0].mxu0
  %206 = vmatprep.mubr.f32.mxu0 0.0
  %207 = vmatmul.mubr.f32.gmra.mrb[0].mxu0 %v90
  %v208 = vpop.f32.mrb[0].mxu0
  %v209 = vadd.f32 0.0, %v208
  %v210 = vpop.f32.mrb[0].mxu0
  %211 = vmatprep.mubr.f32.mxu0 0.0
  %212 = vmatmul.mubr.f32.gmra.mrb[0].mxu0 %v91
  %v213 = vpop.f32.mrb[0].mxu0
  %v214 = vadd.f32 0.0, %v213
  %v215 = vpop.f32.mrb[0].mxu0
  %216 = vmatprep.mubr.f32.mxu0 0.0
  %217 = vmatmul.mubr.f32.gmra.mrb[0].mxu0 %v92
  %v218 = vpop.f32.mrb[0].mxu0
  %v219 = vadd.f32 0.0, %v218
  %v220 = vpop.f32.mrb[0].mxu0
  %221 = vmatprep.mubr.f32.mxu0 0.0
  %222 = vmatmul.mubr.f32.gmra.mrb[0].mxu0 %v93
  %v223 = vpop.f32.mrb[0].mxu0
  %v224 = vadd.f32 0.0, %v223
  %v225 = vpop.f32.mrb[0].mxu0
  %226 = vmatprep.mubr.f32.mxu0 0.0
  %227 = vmatmul.mubr.f32.gmra.mrb[0].mxu0 %v94
  %v228 = vpop.f32.mrb[0].mxu0
  %v229 = vadd.f32 0.0, %v228
  %v230 = vpop.f32.mrb[0].mxu0
  %231 = vmatprep.mubr.f32.mxu0 0.0
  %232 = vmatmul.mubr.f32.gmra.mrb[0].mxu0 %v95
  %v233 = vpop.f32.mrb[0].mxu0
  %v234 = vadd.f32 0.0, %v233
  %v235 = vpop.f32.mrb[0].mxu0
  %236 = vmatprep.mubr.f32.mxu0 0.0
  %237 = vmatmul.mubr.f32.gmra.mrb[0].mxu0 %v96
  %v238 = vpop.f32.mrb[0].mxu0
  %v239 = vadd.f32 0.0, %v238
  %v240 = vpop.f32.mrb[0].mxu0
  %241 = vdwg.mxu0
  %v242 = vadd.f32 %v65, %v164
  %v243 = vadd.f32 %v66, %v169
  %v244 = vadd.f32 %v67, %v174
  %v245 = vadd.f32 %v68, %v179
  %v246 = vadd.f32 %v69, %v184
  %v247 = vadd.f32 %v70, %v189
  %v248 = vadd.f32 %v71, %v194
  %v249 = vadd.f32 %v72, %v199
  %v250 = vadd.f32 %v73, %v204
  %v251 = vadd.f32 %v74, %v209
  %v252 = vadd.f32 %v75, %v214
  %v253 = vadd.f32 %v76, %v219
  %v254 = vadd.f32 %v77, %v224
  %v255 = vadd.f32 %v78, %v229
  %v256 = vadd.f32 %v79, %v234
  %v257 = vadd.f32 %v80, %v239
  %258 = vst [vmem:[#allocation2] sm:$0xff] %v242
  %259 = vst [vmem:[#allocation2 + $0x8] sm:$0xff] %v243
  %260 = vst [vmem:[#allocation2 + $0x10] sm:$0xff] %v244
  %261 = vst [vmem:[#allocation2 + $0x18] sm:$0xff] %v245
  %262 = vst [vmem:[#allocation2 + $0x20] sm:$0xff] %v246
  %263 = vst [vmem:[#allocation2 + $0x28] sm:$0xff] %v247
  %264 = vst [vmem:[#allocation2 + $0x30] sm:$0xff] %v248
  %265 = vst [vmem:[#allocation2 + $0x38] sm:$0xff] %v249
  %266 = vst [vmem:[#allocation2 + $0x40] sm:$0xff] %v250
  %267 = vst [vmem:[#allocation2 + $0x48] sm:$0xff] %v251
  %268 = vst [vmem:[#allocation2 + $0x50] sm:$0xff] %v252
  %269 = vst [vmem:[#allocation2 + $0x58] sm:$0xff] %v253
  %270 = vst [vmem:[#allocation2 + $0x60] sm:$0xff] %v254
  %271 = vst [vmem:[#allocation2 + $0x68] sm:$0xff] %v255
  %272 = vst [vmem:[#allocation2 + $0x70] sm:$0xff] %v256
  %273 = vst [vmem:[#allocation2 + $0x78] sm:$0xff] %v257
  // Predicated region
  $region26: #{basic_gnn_forward.5} parent=0 // pred_check
    %p274 = pneg %p20
  $region27: #{basic_gnn_forward.5} parent=0 // pred_check_branch
    %276 = sbr.rel (%p274) target = $region29
  $region28: #{basic_gnn_forward.5} parent=0 // pred_region
    %v277 = vld [vmem:[#allocation2] sm:$0xff]
    %v278 = vld [vmem:[#allocation2 + $0x8] sm:$0xff]
    %v279 = vld [vmem:[#allocation2 + $0x10] sm:$0xff]
    %v280 = vld [vmem:[#allocation2 + $0x18] sm:$0xff]
    %v281 = vld [vmem:[#allocation2 + $0x20] sm:$0xff]
    %v282 = vld [vmem:[#allocation2 + $0x28] sm:$0xff]
    %v283 = vld [vmem:[#allocation2 + $0x30] sm:$0xff]
    %v284 = vld [vmem:[#allocation2 + $0x38] sm:$0xff]
    %v285 = vld [vmem:[#allocation2 + $0x40] sm:$0xff]
    %v286 = vld [vmem:[#allocation2 + $0x48] sm:$0xff]
    %v287 = vld [vmem:[#allocation2 + $0x50] sm:$0xff]
    %v288 = vld [vmem:[#allocation2 + $0x58] sm:$0xff]
    %v289 = vld [vmem:[#allocation2 + $0x60] sm:$0xff]
    %v290 = vld [vmem:[#allocation2 + $0x68] sm:$0xff]
    %v291 = vld [vmem:[#allocation2 + $0x70] sm:$0xff]
    %v292 = vld [vmem:[#allocation2 + $0x78] sm:$0xff]
    %v293 = vmax.f32 %v277, 0.0
    %v294 = vmax.f32 %v278, 0.0
    %v295 = vmax.f32 %v279, 0.0
    %v296 = vmax.f32 %v280, 0.0
    %v297 = vmax.f32 %v281, 0.0
    %v298 = vmax.f32 %v282, 0.0
    %v299 = vmax.f32 %v283, 0.0
    %v300 = vmax.f32 %v284, 0.0
    %v301 = vmax.f32 %v285, 0.0
    %v302 = vmax.f32 %v286, 0.0
    %v303 = vmax.f32 %v287, 0.0
    %v304 = vmax.f32 %v288, 0.0
    %v305 = vmax.f32 %v289, 0.0
    %v306 = vmax.f32 %v290, 0.0
    %v307 = vmax.f32 %v291, 0.0
    %v308 = vmax.f32 %v292, 0.0
    %v309 = vld [vmem:[%s3] sm:$0xff]
    %v310 = vld [vmem:[%s3 + $0x8] sm:$0xff]
    %v311 = vld [vmem:[%s3 + $0x10] sm:$0xff]
    %v312 = vld [vmem:[%s3 + $0x18] sm:$0xff]
    %v313 = vld [vmem:[%s3 + $0x20] sm:$0xff]
    %v314 = vld [vmem:[%s3 + $0x28] sm:$0xff]
    %v315 = vld [vmem:[%s3 + $0x30] sm:$0xff]
    %v316 = vld [vmem:[%s3 + $0x38] sm:$0xff]
    %v317 = vld [vmem:[%s3 + $0x40] sm:$0xff]
    %v318 = vld [vmem:[%s3 + $0x48] sm:$0xff]
    %v319 = vld [vmem:[%s3 + $0x50] sm:$0xff]
    %v320 = vld [vmem:[%s3 + $0x58] sm:$0xff]
    %v321 = vld [vmem:[%s3 + $0x60] sm:$0xff]
    %v322 = vld [vmem:[%s3 + $0x68] sm:$0xff]
    %v323 = vld [vmem:[%s3 + $0x70] sm:$0xff]
    %v324 = vld [vmem:[%s3 + $0x78] sm:$0xff]
    %v325 = vld [vmem:[%s4] sm:$0x1]
    %v327 = vlaneseq
    %v328 = vshrl.u32 %v327, 7
    %v329 = vsub.s32 0, %v328
    %v330 = vrot.slane %v325, %v329
    %332 = vmatprep.subr.mxu0 0.0
    %333 = vmatpush1.msra.mxu0 %v309
    %334 = vmatprep.subr.mxu0 0.0
    %335 = vmatpush1.msra.mxu0 %v310
    %336 = vmatprep.subr.mxu0 0.0
    %337 = vmatpush1.msra.mxu0 %v311
    %338 = vmatprep.subr.mxu0 0.0
    %339 = vmatpush1.msra.mxu0 %v312
    %340 = vmatprep.subr.mxu0 0.0
    %341 = vmatpush1.msra.mxu0 %v313
    %342 = vmatprep.subr.mxu0 0.0
    %343 = vmatpush1.msra.mxu0 %v314
    %344 = vmatprep.subr.mxu0 0.0
    %345 = vmatpush1.msra.mxu0 %v315
    %346 = vmatprep.subr.mxu0 0.0
    %347 = vmatpush1.msra.mxu0 %v316
    %348 = vmatprep.subr.mxu0 0.0
    %349 = vmatpush1.msra.mxu0 %v317
    %350 = vmatprep.subr.mxu0 0.0
    %351 = vmatpush1.msra.mxu0 %v318
    %352 = vmatprep.subr.mxu0 0.0
    %353 = vmatpush1.msra.mxu0 %v319
    %354 = vmatprep.subr.mxu0 0.0
    %355 = vmatpush1.msra.mxu0 %v320
    %356 = vmatprep.subr.mxu0 0.0
    %357 = vmatpush1.msra.mxu0 %v321
    %358 = vmatprep.subr.mxu0 0.0
    %359 = vmatpush1.msra.mxu0 %v322
    %360 = vmatprep.subr.mxu0 0.0
    %361 = vmatpush1.msra.mxu0 %v323
    %362 = vmatprep.subr.mxu0 0.0
    %363 = vmatpush1.msra.mxu0 %v324
    %364 = vmatprep.subr.mxu0 0.0
    %365 = vmatpush1.msra.mxu0 0.0
    %366 = vmatprep.subr.mxu0 0.0
    %367 = vmatpush1.msra.mxu0 0.0
    %368 = vmatprep.subr.mxu0 0.0
    %369 = vmatpush1.msra.mxu0 0.0
    %370 = vmatprep.subr.mxu0 0.0
    %371 = vmatpush1.msra.mxu0 0.0
    %372 = vmatprep.subr.mxu0 0.0
    %373 = vmatpush1.msra.mxu0 0.0
    %374 = vmatprep.subr.mxu0 0.0
    %375 = vmatpush1.msra.mxu0 0.0
    %376 = vmatprep.subr.mxu0 0.0
    %377 = vmatpush1.msra.mxu0 0.0
    %378 = vmatprep.subr.mxu0 0.0
    %379 = vmatpush1.msra.mxu0 0.0
    %380 = vmatprep.subr.mxu0 0.0
    %381 = vmatpush1.msra.mxu0 0.0
    %382 = vmatprep.subr.mxu0 0.0
    %383 = vmatpush1.msra.mxu0 0.0
    %384 = vmatprep.subr.mxu0 0.0
    %385 = vmatpush1.msra.mxu0 0.0
    %386 = vmatprep.subr.mxu0 0.0
    %387 = vmatpush1.msra.mxu0 0.0
    %388 = vmatprep.subr.mxu0 0.0
    %389 = vmatpush1.msra.mxu0 0.0
    %390 = vmatprep.subr.mxu0 0.0
    %391 = vmatpush1.msra.mxu0 0.0
    %392 = vmatprep.subr.mxu0 0.0
    %393 = vmatpush1.msra.mxu0 0.0
    %394 = vmatprep.subr.mxu0 0.0
    %395 = vmatpush1.msra.mxu0 0.0
    %396 = vmatprep.mubr.f32.mxu0 0.0
    %397 = vmatmul.mubr.f32.gmra.mrb[0].mxu0 %v293
    %v398 = vpop.f32.mrb[0].mxu0
    %v399 = vadd.f32 %v330, %v398
    %v400 = vpop.f32.mrb[0].mxu0
    %401 = vmatprep.mubr.f32.mxu0 0.0
    %402 = vmatmul.mubr.f32.gmra.mrb[0].mxu0 %v294
    %v403 = vpop.f32.mrb[0].mxu0
    %v404 = vadd.f32 %v330, %v403
    %v405 = vpop.f32.mrb[0].mxu0
    %406 = vmatprep.mubr.f32.mxu0 0.0
    %407 = vmatmul.mubr.f32.gmra.mrb[0].mxu0 %v295
    %v408 = vpop.f32.mrb[0].mxu0
    %v409 = vadd.f32 %v330, %v408
    %v410 = vpop.f32.mrb[0].mxu0
    %411 = vmatprep.mubr.f32.mxu0 0.0
    %412 = vmatmul.mubr.f32.gmra.mrb[0].mxu0 %v296
    %v413 = vpop.f32.mrb[0].mxu0
    %v414 = vadd.f32 %v330, %v413
    %v415 = vpop.f32.mrb[0].mxu0
    %416 = vmatprep.mubr.f32.mxu0 0.0
    %417 = vmatmul.mubr.f32.gmra.mrb[0].mxu0 %v297
    %v418 = vpop.f32.mrb[0].mxu0
    %v419 = vadd.f32 %v330, %v418
    %v420 = vpop.f32.mrb[0].mxu0
    %421 = vmatprep.mubr.f32.mxu0 0.0
    %422 = vmatmul.mubr.f32.gmra.mrb[0].mxu0 %v298
    %v423 = vpop.f32.mrb[0].mxu0
    %v424 = vadd.f32 %v330, %v423
    %v425 = vpop.f32.mrb[0].mxu0
    %426 = vmatprep.mubr.f32.mxu0 0.0
    %427 = vmatmul.mubr.f32.gmra.mrb[0].mxu0 %v299
    %v428 = vpop.f32.mrb[0].mxu0
    %v429 = vadd.f32 %v330, %v428
    %v430 = vpop.f32.mrb[0].mxu0
    %431 = vmatprep.mubr.f32.mxu0 0.0
    %432 = vmatmul.mubr.f32.gmra.mrb[0].mxu0 %v300
    %v433 = vpop.f32.mrb[0].mxu0
    %v434 = vadd.f32 %v330, %v433
    %v435 = vpop.f32.mrb[0].mxu0
    %436 = vmatprep.mubr.f32.mxu0 0.0
    %437 = vmatmul.mubr.f32.gmra.mrb[0].mxu0 %v301
    %v438 = vpop.f32.mrb[0].mxu0
    %v439 = vadd.f32 %v330, %v438
    %v440 = vpop.f32.mrb[0].mxu0
    %441 = vmatprep.mubr.f32.mxu0 0.0
    %442 = vmatmul.mubr.f32.gmra.mrb[0].mxu0 %v302
    %v443 = vpop.f32.mrb[0].mxu0
    %v444 = vadd.f32 %v330, %v443
    %v445 = vpop.f32.mrb[0].mxu0
    %446 = vmatprep.mubr.f32.mxu0 0.0
    %447 = vmatmul.mubr.f32.gmra.mrb[0].mxu0 %v303
    %v448 = vpop.f32.mrb[0].mxu0
    %v449 = vadd.f32 %v330, %v448
    %v450 = vpop.f32.mrb[0].mxu0
    %451 = vmatprep.mubr.f32.mxu0 0.0
    %452 = vmatmul.mubr.f32.gmra.mrb[0].mxu0 %v304
    %v453 = vpop.f32.mrb[0].mxu0
    %v454 = vadd.f32 %v330, %v453
    %v455 = vpop.f32.mrb[0].mxu0
    %456 = vmatprep.mubr.f32.mxu0 0.0
    %457 = vmatmul.mubr.f32.gmra.mrb[0].mxu0 %v305
    %v458 = vpop.f32.mrb[0].mxu0
    %v459 = vadd.f32 %v330, %v458
    %v460 = vpop.f32.mrb[0].mxu0
    %461 = vmatprep.mubr.f32.mxu0 0.0
    %462 = vmatmul.mubr.f32.gmra.mrb[0].mxu0 %v306
    %v463 = vpop.f32.mrb[0].mxu0
    %v464 = vadd.f32 %v330, %v463
    %v465 = vpop.f32.mrb[0].mxu0
    %466 = vmatprep.mubr.f32.mxu0 0.0
    %467 = vmatmul.mubr.f32.gmra.mrb[0].mxu0 %v307
    %v468 = vpop.f32.mrb[0].mxu0
    %v469 = vadd.f32 %v330, %v468
    %v470 = vpop.f32.mrb[0].mxu0
    %471 = vmatprep.mubr.f32.mxu0 0.0
    %472 = vmatmul.mubr.f32.gmra.mrb[0].mxu0 %v308
    %v473 = vpop.f32.mrb[0].mxu0
    %v474 = vadd.f32 %v330, %v473
    %v475 = vpop.f32.mrb[0].mxu0
    %476 = vdwg.mxu0
    %477 = vst [vmem:[%s5] sm:$0xff] %v399
    %478 = vst [vmem:[%s5 + $0x8] sm:$0xff] %v404
    %479 = vst [vmem:[%s5 + $0x10] sm:$0xff] %v409
    %480 = vst [vmem:[%s5 + $0x18] sm:$0xff] %v414
    %481 = vst [vmem:[%s5 + $0x20] sm:$0xff] %v419
    %482 = vst [vmem:[%s5 + $0x28] sm:$0xff] %v424
    %483 = vst [vmem:[%s5 + $0x30] sm:$0xff] %v429
    %484 = vst [vmem:[%s5 + $0x38] sm:$0xff] %v434
    %485 = vst [vmem:[%s5 + $0x40] sm:$0xff] %v439
    %486 = vst [vmem:[%s5 + $0x48] sm:$0xff] %v444
    %487 = vst [vmem:[%s5 + $0x50] sm:$0xff] %v449
    %488 = vst [vmem:[%s5 + $0x58] sm:$0xff] %v454
    %489 = vst [vmem:[%s5 + $0x60] sm:$0xff] %v459
    %490 = vst [vmem:[%s5 + $0x68] sm:$0xff] %v464
    %491 = vst [vmem:[%s5 + $0x70] sm:$0xff] %v469
    %492 = vst [vmem:[%s5 + $0x78] sm:$0xff] %v474
  $region29: #{basic_gnn_forward.5} parent=0 // pred_fallthru
    _
  // Predicated region
  $region30: #{basic_gnn_forward.5} parent=0 // pred_check
    _
  $region31: #{basic_gnn_forward.5} parent=0 // pred_check_branch
    %494 = sbr.rel (0) target = $region33
  $region32: #{basic_gnn_forward.5} parent=0 // pred_region
    _
  $region33: #{basic_gnn_forward.5} parent=0 // pred_fallthru
    _
  // Predicated region
  $region34: #{basic_gnn_forward.5} parent=0 // pred_check
    _
  $region35: #{basic_gnn_forward.5} parent=0 // pred_check_branch
    %496 = sbr.rel (0) target = $region37
  $region36: #{basic_gnn_forward.5} parent=0 // pred_region
    _
  $region37: #{basic_gnn_forward.5} parent=0 // pred_fallthru
    _

</llo_original>
